<compile_context>
chip_gen: v6e
topology: v6e:2x2x1
jax: 0.10.0
libtpu: 0.0.40
codegen_flags: <defaults>
</compile_context>

<pallas_src>
import functools

import jax
import jax.numpy as jnp
from jax import lax
from jax.experimental import pallas as pl
from jax.experimental.pallas import tpu as pltpu


def _dsconv_kernel(xm_ref, xh_ref, wdw_ref, bdw_ref, wpw_ref, bpw_ref, o_ref,
                   *, kh, kw, use_mxu):
    """One (batch, row-tile) output block per grid step.

    xm_ref : (1, TH, Wp, Cin)        main row strip of the padded NHWC input
    xh_ref : (1, 1, kh-1, Wp, Cin)   halo rows just below the strip
    wdw_ref: (kh*kw, Cin)            depthwise weights, tap-major
    bdw_ref: (1, Cin)
    wpw_ref: (Cin, Cout)             pointwise weights
    bpw_ref: (1, Cout)
    o_ref  : (1, TH, Wo, Cout)
    """
    TH = o_ref.shape[1]
    Wo = o_ref.shape[2]
    Cout = o_ref.shape[3]
    Cin = xm_ref.shape[3]

    # Hoisted weight / bias loads + casts (once per tile, not per tap).
    wdw = wdw_ref[...].astype(jnp.float32)        # (kh*kw, Cin)
    bdw = bdw_ref[...].astype(jnp.float32)        # (1, Cin)
    bpw = bpw_ref[...].astype(jnp.float32)        # (1, Cout)

    # Full strip for this tile: padded rows [t*TH, t*TH + TH + kh - 1).
    strip = jnp.concatenate([xm_ref[0], xh_ref[0, 0]], axis=0)   # (TH+kh-1, Wp, Cin)

    # The kw W-shifted copies are produced once and reused for every ky tap;
    # the ky shifts below are then pure major-dim slices (free).
    xs = [strip[:, kx:kx + Wo, :].astype(jnp.float32) for kx in range(kw)]

    # ---- depthwise kh x kw conv (stride 1) + SiLU, f32 accumulation on the VPU ----
    acc = jnp.zeros((TH, Wo, Cin), jnp.float32) + bdw
    for ky in range(kh):
        for kx in range(kw):
            tap = xs[kx][ky:ky + TH]                                  # (TH, Wo, Cin)
            k = ky * kw + kx
            acc = acc + tap * wdw[k:k + 1, :]
    dw = acc * jax.nn.sigmoid(acc)                                    # SiLU

    # ---- pointwise 1x1 conv + SiLU ----
    if use_mxu:
        # MXU path: (TH*Wo, Cin) x (Cin, Cout).  Feed bf16 operands directly when
        # weights are bf16 (f32 accumulation via preferred_element_type).
        lhs = dw.reshape(TH * Wo, Cin)
        if wpw_ref.dtype == jnp.bfloat16:
            pw = jnp.dot(lhs.astype(jnp.bfloat16), wpw_ref[...],
                         preferred_element_type=jnp.float32)
        else:
            pw = jnp.dot(lhs, wpw_ref[...].astype(jnp.float32),
                         preferred_element_type=jnp.float32,
                         precision=lax.Precision.HIGHEST)
        pw = pw.reshape(TH, Wo, Cout) + bpw
    else:
        # Tiny channel counts (e.g. Cin=4/Cout=8): a degenerate matmul leaves the
        # MXU idle, so do the 1x1 conv as a VPU broadcast-MAC.
        wpw = wpw_ref[...].astype(jnp.float32)                        # (Cin, Cout)
        pw = jnp.zeros((TH, Wo, Cout), jnp.float32) + bpw
        for ci in range(Cin):
            pw = pw + dw[:, :, ci:ci + 1] * wpw[ci:ci + 1, :]
    out = pw * jax.nn.sigmoid(pw)                                     # SiLU

    o_ref[0] = out.astype(o_ref.dtype)


def _pick_tile_h(Ho, Wp, Wo, Cin, Cout, kh, kw, itemsize,
                 vmem_budget_bytes=4 * 1024 * 1024):
    """Largest row tile dividing Ho whose per-step working set stays well inside
    every generation's VMEM (v5e 16 MiB scoped default, v6e 32 MiB, v7x 64 MiB
    physical)."""
    best = 1
    for th in range(1, Ho + 1):
        if Ho % th:
            continue
        thp = th + kh - 1
        io_blocks = 2 * itemsize * (th * Wp * Cin + (kh - 1) * Wp * Cin
                                    + th * Wo * Cout)      # double-buffered blocks
        f32_values = 4 * (thp * Wp * Cin                    # concatenated strip
                          + kw * thp * Wo * Cin             # shifted copies
                          + 2 * th * Wo * Cin               # acc + dw
                          + 2 * th * Wo * Cout)             # pw + out
        if io_blocks + f32_values <= vmem_budget_bytes:
            best = th
    return best


def depthwise_separable_conv2d(x_nchw, w_dw, b_dw, w_pw, b_pw, *,
                               stride=1, padding=1, tile_h=None):
    """Forward pass of DepthwiseSeparableConv2d.

    x_nchw : (N, Cin, H, W)
    w_dw   : (Cin, 1, kh, kw)    PyTorch depthwise Conv2d weight
    b_dw   : (Cin,)
    w_pw   : (Cout, Cin, 1, 1)   PyTorch pointwise Conv2d weight
    b_pw   : (Cout,)
    returns (N, Cout, Ho, Wo) with Ho = H + 2*padding - kh + 1 (stride 1).
    """
    N, Cin, H, W = x_nchw.shape
    cin_w, grp, kh, kw = w_dw.shape
    Cout, cin_p = w_pw.shape[:2]
    assert cin_w == Cin and grp == 1 and cin_p == Cin
    assert stride == 1, "only stride=1 (the module default) is implemented"
    # TODO(synk): stride > 1 and kernel_size == 1 fall outside this halo-strip scheme.
    assert kh >= 2

    Hp, Wp = H + 2 * padding, W + 2 * padding
    Ho, Wo = Hp - kh + 1, Wp - kw + 1
    assert Ho > 0 and Wo > 0

    # PyTorch weight layouts -> kernel layouts.
    w_dw_k = jnp.transpose(w_dw[:, 0], (1, 2, 0)).reshape(kh * kw, Cin)   # (kh*kw, Cin)
    w_pw_k = jnp.transpose(w_pw[:, :, 0, 0], (1, 0))                      # (Cin, Cout)
    b_dw_k = b_dw.reshape(1, Cin)
    b_pw_k = b_pw.reshape(1, Cout)

    # NCHW -> NHWC (channels on the lane axis) + spatial zero-pad.
    # TODO(synk): keep the surrounding model NHWC end-to-end to drop these two
    # extra HBM passes; they are pure layout glue for the NCHW-facing API.
    x = jnp.transpose(x_nchw, (0, 2, 3, 1))
    x = jnp.pad(x, ((0, 0), (padding, padding), (padding, padding), (0, 0)))

    if tile_h is None:
        tile_h = _pick_tile_h(Ho, Wp, Wo, Cin, Cout, kh, kw, x.dtype.itemsize)
    assert Ho % tile_h == 0, "tile_h must divide the output height"
    n_tiles = Ho // tile_h

    # Tiny pre-extracted halo (the kh-1 rows just below each strip) so the
    # per-step strips themselves never overlap (BlockSpec blocks cannot overlap).
    halo = jnp.stack(
        [x[:, (t + 1) * tile_h:(t + 1) * tile_h + kh - 1] for t in range(n_tiles)],
        axis=1)                                             # (N, nT, kh-1, Wp, Cin)

    use_mxu = Cin >= 32
    kernel = functools.partial(_dsconv_kernel, kh=kh, kw=kw, use_mxu=use_mxu)

    out_nhwc = pl.pallas_call(
        kernel,
        out_shape=jax.ShapeDtypeStruct((N, Ho, Wo, Cout), x_nchw.dtype),
        grid_spec=pltpu.PrefetchScalarGridSpec(
            num_scalar_prefetch=0,
            grid=(N, n_tiles),
            in_specs=[
                pl.BlockSpec((1, tile_h, Wp, Cin), lambda n, t: (n, t, 0, 0)),
                pl.BlockSpec((1, 1, kh - 1, Wp, Cin), lambda n, t: (n, t, 0, 0, 0)),
                pl.BlockSpec((kh * kw, Cin), lambda n, t: (0, 0)),
                pl.BlockSpec((1, Cin), lambda n, t: (0, 0)),
                pl.BlockSpec((Cin, Cout), lambda n, t: (0, 0)),
                pl.BlockSpec((1, Cout), lambda n, t: (0, 0)),
            ],
            out_specs=pl.BlockSpec((1, tile_h, Wo, Cout), lambda n, t: (n, t, 0, 0)),
        ),
        compiler_params=pltpu.CompilerParams(
            dimension_semantics=("parallel", "parallel"),
            vmem_limit_bytes=32 * 1024 * 1024,
        ),
    )(x, halo, w_dw_k, b_dw_k, w_pw_k, b_pw_k)

    # NHWC -> NCHW for the PyTorch-facing API.
    return jnp.transpose(out_nhwc, (0, 3, 1, 2))


def _reference(x_nchw, w_dw, b_dw, w_pw, b_pw, *, padding=1):
    """Plain-JAX reference matching PyTorch Conv2d semantics."""
    N, Cin, H, W = x_nchw.shape
    # depthwise: HWIO with I=1, O=Cin, feature_group_count=Cin
    w = jnp.transpose(w_dw, (2, 3, 1, 0))                   # (kh, kw, 1, Cin)
    y = lax.conv_general_dilated(
        x_nchw.astype(jnp.float32), w.astype(jnp.float32),
        window_strides=(1, 1), padding=[(padding, padding)] * 2,
        dimension_numbers=("NCHW", "HWIO", "NCHW"),
        feature_group_count=Cin, precision=lax.Precision.HIGHEST)
    y = y + b_dw[None, :, None, None]
    y = y * jax.nn.sigmoid(y)
    # pointwise 1x1 (OIHW weight straight from the PyTorch layout)
    z = lax.conv_general_dilated(
        y, w_pw.astype(jnp.float32), window_strides=(1, 1), padding="VALID",
        dimension_numbers=("NCHW", "OIHW", "NCHW"),
        precision=lax.Precision.HIGHEST)
    z = z + b_pw[None, :, None, None]
    z = z * jax.nn.sigmoid(z)
    return z.astype(x_nchw.dtype)


if __name__ == "__main__":
    key = jax.random.PRNGKey(0)
    k1, k2, k3, k4, k5 = jax.random.split(key, 5)

    # Small shapes consistent with the module (PyTorch nn.Conv2d weight layouts).
    N, Cin, H, W = 2, 4, 16, 16
    Cout, K = 8, 3

    x = jax.random.normal(k1, (N, Cin, H, W), jnp.float32)
    w_dw = 0.2 * jax.random.normal(k2, (Cin, 1, K, K), jnp.float32)     # depthwise (C,1,kH,kW)
    b_dw = 0.1 * jax.random.normal(k3, (Cin,), jnp.float32)
    w_pw = 0.2 * jax.random.normal(k4, (Cout, Cin, 1, 1), jnp.float32)  # pointwise (Cout,Cin,1,1)
    b_pw = 0.1 * jax.random.normal(k5, (Cout,), jnp.float32)

    # tile_h=8 -> grid (2, 2): exercises the row-tiling + halo path and gives
    # >= 2 independent parallel work units for v7x's two TensorCores.
    out = depthwise_separable_conv2d(x, w_dw, b_dw, w_pw, b_pw, padding=1, tile_h=8)
    out = jax.block_until_ready(out)
    ref = _reference(x, w_dw, b_dw, w_pw, b_pw, padding=1)
    assert out.shape == (N, Cout, H, W)
    assert jnp.allclose(out, ref, atol=1e-4, rtol=1e-4), \
        float(jnp.max(jnp.abs(out - ref)))

    # Second config: larger channel count -> exercises the MXU pointwise path
    # and the automatic tile-height picker.  (Looser tolerance: MXU f32 passes
    # can be reduced-precision depending on how the compiler honors precision.)
    N2, C2, H2, W2, Co2 = 1, 32, 8, 8, 16
    x2 = jax.random.normal(k1, (N2, C2, H2, W2), jnp.float32)
    w_dw2 = 0.2 * jax.random.normal(k2, (C2, 1, K, K), jnp.float32)
    b_dw2 = 0.1 * jax.random.normal(k3, (C2,), jnp.float32)
    w_pw2 = 0.2 * jax.random.normal(k4, (Co2, C2, 1, 1), jnp.float32)
    b_pw2 = 0.1 * jax.random.normal(k5, (Co2,), jnp.float32)
    out2 = jax.block_until_ready(
        depthwise_separable_conv2d(x2, w_dw2, b_dw2, w_pw2, b_pw2, padding=1))
    ref2 = _reference(x2, w_dw2, b_dw2, w_pw2, b_pw2, padding=1)
    assert out2.shape == (N2, Co2, H2, W2)
    assert jnp.allclose(out2, ref2, atol=1e-2, rtol=1e-2), \
        float(jnp.max(jnp.abs(out2 - ref2)))

    print("KERNEL_OK")
</pallas_src>

<mosaic_0001>
module attributes {stable_mosaic.version = 11 : i64} {
  func.func @_dsconv_kernel(%arg0: i32, %arg1: i32, %arg2: memref<1x8x18x4xf32, #tpu.memory_space<vmem>>, %arg3: memref<1x1x2x18x4xf32, #tpu.memory_space<vmem>>, %arg4: memref<9x4xf32, #tpu.memory_space<vmem>>, %arg5: memref<1x4xf32, #tpu.memory_space<vmem>>, %arg6: memref<4x8xf32, #tpu.memory_space<vmem>>, %arg7: memref<1x8xf32, #tpu.memory_space<vmem>>, %arg8: memref<1x8x16x8xf32, #tpu.memory_space<vmem>>) attributes {dimension_semantics = [#tpu.dimension_semantics<parallel>, #tpu.dimension_semantics<parallel>], iteration_bounds = array<i64: 2, 2>, scalar_prefetch = 0 : i64, scratch_operands = 0 : i64, tpu.core_type = #tpu.core_type<tc>, window_params = [{transform_indices = @transform_0, window_bounds = array<i64: 1, 8, 18, 4>}, {transform_indices = @transform_1, window_bounds = array<i64: 1, 1, 2, 18, 4>}, {pipeline_mode = #tpu.pipeline_mode<synchronous>, transform_indices = @transform_2, window_bounds = array<i64: 9, 4>}, {pipeline_mode = #tpu.pipeline_mode<synchronous>, transform_indices = @transform_3, window_bounds = array<i64: 1, 4>}, {pipeline_mode = #tpu.pipeline_mode<synchronous>, transform_indices = @transform_4, window_bounds = array<i64: 4, 8>}, {pipeline_mode = #tpu.pipeline_mode<synchronous>, transform_indices = @transform_5, window_bounds = array<i64: 1, 8>}, {transform_indices = @transform_6, window_bounds = array<i64: 1, 8, 16, 8>}]} {
    %c0 = arith.constant 0 : index
    %c0_0 = arith.constant 0 : index
    %0 = vector.load %arg4[%c0, %c0_0] : memref<9x4xf32, #tpu.memory_space<vmem>>, vector<9x4xf32>
    %c0_1 = arith.constant 0 : index
    %c0_2 = arith.constant 0 : index
    %1 = vector.load %arg5[%c0_1, %c0_2] : memref<1x4xf32, #tpu.memory_space<vmem>>, vector<1x4xf32>
    %c0_3 = arith.constant 0 : index
    %c0_4 = arith.constant 0 : index
    %2 = vector.load %arg7[%c0_3, %c0_4] : memref<1x8xf32, #tpu.memory_space<vmem>>, vector<1x8xf32>
    %c0_5 = arith.constant 0 : index
    %c0_6 = arith.constant 0 : index
    %c0_7 = arith.constant 0 : index
    %c0_8 = arith.constant 0 : index
    %3 = vector.load %arg2[%c0_5, %c0_6, %c0_7, %c0_8] : memref<1x8x18x4xf32, #tpu.memory_space<vmem>>, vector<1x8x18x4xf32>
    %4 = vector.shape_cast %3 : vector<1x8x18x4xf32> to vector<8x18x4xf32>
    %c0_9 = arith.constant 0 : index
    %c0_10 = arith.constant 0 : index
    %c0_11 = arith.constant 0 : index
    %c0_12 = arith.constant 0 : index
    %c0_13 = arith.constant 0 : index
    %5 = vector.load %arg3[%c0_9, %c0_10, %c0_11, %c0_12, %c0_13] : memref<1x1x2x18x4xf32, #tpu.memory_space<vmem>>, vector<1x1x2x18x4xf32>
    %6 = vector.shape_cast %5 : vector<1x1x2x18x4xf32> to vector<2x18x4xf32>
    %7 = tpu.concatenate %4, %6 in 0 : vector<8x18x4xf32>, vector<2x18x4xf32> -> vector<10x18x4xf32>
    %8 = vector.extract_strided_slice %7 {offsets = [0, 0, 0], sizes = [10, 16, 4], strides = [1, 1, 1]} : vector<10x18x4xf32> to vector<10x16x4xf32>
    %9 = vector.extract_strided_slice %7 {offsets = [0, 1, 0], sizes = [10, 16, 4], strides = [1, 1, 1]} : vector<10x18x4xf32> to vector<10x16x4xf32>
    %10 = vector.extract_strided_slice %7 {offsets = [0, 2, 0], sizes = [10, 16, 4], strides = [1, 1, 1]} : vector<10x18x4xf32> to vector<10x16x4xf32>
    %cst = arith.constant 0.000000e+00 : f32
    %11 = vector.broadcast %cst : f32 to vector<8x16x4xf32>
    %12 = vector.shape_cast %1 : vector<1x4xf32> to vector<1x1x4xf32>
    %13 = vector.broadcast %12 : vector<1x1x4xf32> to vector<8x16x4xf32>
    %14 = arith.addf %11, %13 : vector<8x16x4xf32>
    %15 = vector.extract_strided_slice %8 {offsets = [0, 0, 0], sizes = [8, 16, 4], strides = [1, 1, 1]} : vector<10x16x4xf32> to vector<8x16x4xf32>
    %16 = vector.extract_strided_slice %0 {offsets = [0, 0], sizes = [1, 4], strides = [1, 1]} : vector<9x4xf32> to vector<1x4xf32>
    %17 = vector.shape_cast %16 : vector<1x4xf32> to vector<1x1x4xf32>
    %18 = vector.broadcast %17 : vector<1x1x4xf32> to vector<8x16x4xf32>
    %19 = arith.mulf %15, %18 : vector<8x16x4xf32>
    %20 = arith.addf %14, %19 : vector<8x16x4xf32>
    %21 = vector.extract_strided_slice %9 {offsets = [0, 0, 0], sizes = [8, 16, 4], strides = [1, 1, 1]} : vector<10x16x4xf32> to vector<8x16x4xf32>
    %22 = vector.extract_strided_slice %0 {offsets = [1, 0], sizes = [1, 4], strides = [1, 1]} : vector<9x4xf32> to vector<1x4xf32>
    %23 = vector.shape_cast %22 : vector<1x4xf32> to vector<1x1x4xf32>
    %24 = vector.broadcast %23 : vector<1x1x4xf32> to vector<8x16x4xf32>
    %25 = arith.mulf %21, %24 : vector<8x16x4xf32>
    %26 = arith.addf %20, %25 : vector<8x16x4xf32>
    %27 = vector.extract_strided_slice %10 {offsets = [0, 0, 0], sizes = [8, 16, 4], strides = [1, 1, 1]} : vector<10x16x4xf32> to vector<8x16x4xf32>
    %28 = vector.extract_strided_slice %0 {offsets = [2, 0], sizes = [1, 4], strides = [1, 1]} : vector<9x4xf32> to vector<1x4xf32>
    %29 = vector.shape_cast %28 : vector<1x4xf32> to vector<1x1x4xf32>
    %30 = vector.broadcast %29 : vector<1x1x4xf32> to vector<8x16x4xf32>
    %31 = arith.mulf %27, %30 : vector<8x16x4xf32>
    %32 = arith.addf %26, %31 : vector<8x16x4xf32>
    %33 = vector.extract_strided_slice %8 {offsets = [1, 0, 0], sizes = [8, 16, 4], strides = [1, 1, 1]} : vector<10x16x4xf32> to vector<8x16x4xf32>
    %34 = vector.extract_strided_slice %0 {offsets = [3, 0], sizes = [1, 4], strides = [1, 1]} : vector<9x4xf32> to vector<1x4xf32>
    %35 = vector.shape_cast %34 : vector<1x4xf32> to vector<1x1x4xf32>
    %36 = vector.broadcast %35 : vector<1x1x4xf32> to vector<8x16x4xf32>
    %37 = arith.mulf %33, %36 : vector<8x16x4xf32>
    %38 = arith.addf %32, %37 : vector<8x16x4xf32>
    %39 = vector.extract_strided_slice %9 {offsets = [1, 0, 0], sizes = [8, 16, 4], strides = [1, 1, 1]} : vector<10x16x4xf32> to vector<8x16x4xf32>
    %40 = vector.extract_strided_slice %0 {offsets = [4, 0], sizes = [1, 4], strides = [1, 1]} : vector<9x4xf32> to vector<1x4xf32>
    %41 = vector.shape_cast %40 : vector<1x4xf32> to vector<1x1x4xf32>
    %42 = vector.broadcast %41 : vector<1x1x4xf32> to vector<8x16x4xf32>
    %43 = arith.mulf %39, %42 : vector<8x16x4xf32>
    %44 = arith.addf %38, %43 : vector<8x16x4xf32>
    %45 = vector.extract_strided_slice %10 {offsets = [1, 0, 0], sizes = [8, 16, 4], strides = [1, 1, 1]} : vector<10x16x4xf32> to vector<8x16x4xf32>
    %46 = vector.extract_strided_slice %0 {offsets = [5, 0], sizes = [1, 4], strides = [1, 1]} : vector<9x4xf32> to vector<1x4xf32>
    %47 = vector.shape_cast %46 : vector<1x4xf32> to vector<1x1x4xf32>
    %48 = vector.broadcast %47 : vector<1x1x4xf32> to vector<8x16x4xf32>
    %49 = arith.mulf %45, %48 : vector<8x16x4xf32>
    %50 = arith.addf %44, %49 : vector<8x16x4xf32>
    %51 = vector.extract_strided_slice %8 {offsets = [2, 0, 0], sizes = [8, 16, 4], strides = [1, 1, 1]} : vector<10x16x4xf32> to vector<8x16x4xf32>
    %52 = vector.extract_strided_slice %0 {offsets = [6, 0], sizes = [1, 4], strides = [1, 1]} : vector<9x4xf32> to vector<1x4xf32>
    %53 = vector.shape_cast %52 : vector<1x4xf32> to vector<1x1x4xf32>
    %54 = vector.broadcast %53 : vector<1x1x4xf32> to vector<8x16x4xf32>
    %55 = arith.mulf %51, %54 : vector<8x16x4xf32>
    %56 = arith.addf %50, %55 : vector<8x16x4xf32>
    %57 = vector.extract_strided_slice %9 {offsets = [2, 0, 0], sizes = [8, 16, 4], strides = [1, 1, 1]} : vector<10x16x4xf32> to vector<8x16x4xf32>
    %58 = vector.extract_strided_slice %0 {offsets = [7, 0], sizes = [1, 4], strides = [1, 1]} : vector<9x4xf32> to vector<1x4xf32>
    %59 = vector.shape_cast %58 : vector<1x4xf32> to vector<1x1x4xf32>
    %60 = vector.broadcast %59 : vector<1x1x4xf32> to vector<8x16x4xf32>
    %61 = arith.mulf %57, %60 : vector<8x16x4xf32>
    %62 = arith.addf %56, %61 : vector<8x16x4xf32>
    %63 = vector.extract_strided_slice %10 {offsets = [2, 0, 0], sizes = [8, 16, 4], strides = [1, 1, 1]} : vector<10x16x4xf32> to vector<8x16x4xf32>
    %64 = vector.extract_strided_slice %0 {offsets = [8, 0], sizes = [1, 4], strides = [1, 1]} : vector<9x4xf32> to vector<1x4xf32>
    %65 = vector.shape_cast %64 : vector<1x4xf32> to vector<1x1x4xf32>
    %66 = vector.broadcast %65 : vector<1x1x4xf32> to vector<8x16x4xf32>
    %67 = arith.mulf %63, %66 : vector<8x16x4xf32>
    %68 = arith.addf %62, %67 : vector<8x16x4xf32>
    %69 = arith.negf %68 : vector<8x16x4xf32>
    %70 = math.exp %69 : vector<8x16x4xf32>
    %cst_14 = arith.constant 1.000000e+00 : f32
    %71 = vector.broadcast %cst_14 : f32 to vector<8x16x4xf32>
    %72 = arith.addf %71, %70 : vector<8x16x4xf32>
    %73 = arith.divf %71, %72 : vector<8x16x4xf32>
    %74 = arith.mulf %68, %73 : vector<8x16x4xf32>
    %c0_15 = arith.constant 0 : index
    %c0_16 = arith.constant 0 : index
    %75 = vector.load %arg6[%c0_15, %c0_16] : memref<4x8xf32, #tpu.memory_space<vmem>>, vector<4x8xf32>
    %cst_17 = arith.constant 0.000000e+00 : f32
    %76 = vector.broadcast %cst_17 : f32 to vector<8x16x8xf32>
    %77 = vector.shape_cast %2 : vector<1x8xf32> to vector<1x1x8xf32>
    %78 = vector.broadcast %77 : vector<1x1x8xf32> to vector<8x16x8xf32>
    %79 = arith.addf %76, %78 : vector<8x16x8xf32>
    %80 = vector.extract_strided_slice %74 {offsets = [0, 0, 0], sizes = [8, 16, 1], strides = [1, 1, 1]} : vector<8x16x4xf32> to vector<8x16x1xf32>
    %81 = vector.extract_strided_slice %75 {offsets = [0, 0], sizes = [1, 8], strides = [1, 1]} : vector<4x8xf32> to vector<1x8xf32>
    %82 = vector.shape_cast %81 : vector<1x8xf32> to vector<1x1x8xf32>
    %83 = vector.broadcast %80 : vector<8x16x1xf32> to vector<8x16x8xf32>
    %84 = vector.broadcast %82 : vector<1x1x8xf32> to vector<8x16x8xf32>
    %85 = arith.mulf %83, %84 : vector<8x16x8xf32>
    %86 = arith.addf %79, %85 : vector<8x16x8xf32>
    %87 = vector.extract_strided_slice %74 {offsets = [0, 0, 1], sizes = [8, 16, 1], strides = [1, 1, 1]} : vector<8x16x4xf32> to vector<8x16x1xf32>
    %88 = vector.extract_strided_slice %75 {offsets = [1, 0], sizes = [1, 8], strides = [1, 1]} : vector<4x8xf32> to vector<1x8xf32>
    %89 = vector.shape_cast %88 : vector<1x8xf32> to vector<1x1x8xf32>
    %90 = vector.broadcast %87 : vector<8x16x1xf32> to vector<8x16x8xf32>
    %91 = vector.broadcast %89 : vector<1x1x8xf32> to vector<8x16x8xf32>
    %92 = arith.mulf %90, %91 : vector<8x16x8xf32>
    %93 = arith.addf %86, %92 : vector<8x16x8xf32>
    %94 = vector.extract_strided_slice %74 {offsets = [0, 0, 2], sizes = [8, 16, 1], strides = [1, 1, 1]} : vector<8x16x4xf32> to vector<8x16x1xf32>
    %95 = vector.extract_strided_slice %75 {offsets = [2, 0], sizes = [1, 8], strides = [1, 1]} : vector<4x8xf32> to vector<1x8xf32>
    %96 = vector.shape_cast %95 : vector<1x8xf32> to vector<1x1x8xf32>
    %97 = vector.broadcast %94 : vector<8x16x1xf32> to vector<8x16x8xf32>
    %98 = vector.broadcast %96 : vector<1x1x8xf32> to vector<8x16x8xf32>
    %99 = arith.mulf %97, %98 : vector<8x16x8xf32>
    %100 = arith.addf %93, %99 : vector<8x16x8xf32>
    %101 = vector.extract_strided_slice %74 {offsets = [0, 0, 3], sizes = [8, 16, 1], strides = [1, 1, 1]} : vector<8x16x4xf32> to vector<8x16x1xf32>
    %102 = vector.extract_strided_slice %75 {offsets = [3, 0], sizes = [1, 8], strides = [1, 1]} : vector<4x8xf32> to vector<1x8xf32>
    %103 = vector.shape_cast %102 : vector<1x8xf32> to vector<1x1x8xf32>
    %104 = vector.broadcast %101 : vector<8x16x1xf32> to vector<8x16x8xf32>
    %105 = vector.broadcast %103 : vector<1x1x8xf32> to vector<8x16x8xf32>
    %106 = arith.mulf %104, %105 : vector<8x16x8xf32>
    %107 = arith.addf %100, %106 : vector<8x16x8xf32>
    %108 = arith.negf %107 : vector<8x16x8xf32>
    %109 = math.exp %108 : vector<8x16x8xf32>
    %cst_18 = arith.constant 1.000000e+00 : f32
    %110 = vector.broadcast %cst_18 : f32 to vector<8x16x8xf32>
    %111 = arith.addf %110, %109 : vector<8x16x8xf32>
    %112 = arith.divf %110, %111 : vector<8x16x8xf32>
    %113 = arith.mulf %107, %112 : vector<8x16x8xf32>
    %c0_19 = arith.constant 0 : index
    %c0_20 = arith.constant 0 : index
    %c0_21 = arith.constant 0 : index
    %c0_22 = arith.constant 0 : index
    %114 = vector.load %arg8[%c0_19, %c0_20, %c0_21, %c0_22] : memref<1x8x16x8xf32, #tpu.memory_space<vmem>>, vector<1x8x16x8xf32>
    %115 = vector.shape_cast %114 : vector<1x8x16x8xf32> to vector<8x16x8xf32>
    %116 = vector.shape_cast %113 : vector<8x16x8xf32> to vector<1x8x16x8xf32>
    tpu.vector_store %arg8[%c0_19, %c0_20, %c0_21, %c0_22], %116 {strides = array<i32>} : memref<1x8x16x8xf32, #tpu.memory_space<vmem>>, vector<1x8x16x8xf32>,
    return
  }
  func.func @transform_0(%arg0: i32, %arg1: i32) -> (i32, i32, i32, i32) {
    %c0_i32 = arith.constant 0 : i32
    %c0_i32_0 = arith.constant 0 : i32
    %c0_i32_1 = arith.constant 0 : i32
    return %arg0, %arg1, %c0_i32, %c0_i32_0 : i32, i32, i32, i32
  }
  func.func @transform_1(%arg0: i32, %arg1: i32) -> (i32, i32, i32, i32, i32) {
    %c0_i32 = arith.constant 0 : i32
    %c0_i32_0 = arith.constant 0 : i32
    %c0_i32_1 = arith.constant 0 : i32
    %c0_i32_2 = arith.constant 0 : i32
    return %arg0, %arg1, %c0_i32, %c0_i32_0, %c0_i32_1 : i32, i32, i32, i32, i32
  }
  func.func @transform_2(%arg0: i32, %arg1: i32) -> (i32, i32) {
    %c0_i32 = arith.constant 0 : i32
    %c0_i32_0 = arith.constant 0 : i32
    %c0_i32_1 = arith.constant 0 : i32
    return %c0_i32, %c0_i32_0 : i32, i32
  }
  func.func @transform_3(%arg0: i32, %arg1: i32) -> (i32, i32) {
    %c0_i32 = arith.constant 0 : i32
    %c0_i32_0 = arith.constant 0 : i32
    %c0_i32_1 = arith.constant 0 : i32
    return %c0_i32, %c0_i32_0 : i32, i32
  }
  func.func @transform_4(%arg0: i32, %arg1: i32) -> (i32, i32) {
    %c0_i32 = arith.constant 0 : i32
    %c0_i32_0 = arith.constant 0 : i32
    %c0_i32_1 = arith.constant 0 : i32
    return %c0_i32, %c0_i32_0 : i32, i32
  }
  func.func @transform_5(%arg0: i32, %arg1: i32) -> (i32, i32) {
    %c0_i32 = arith.constant 0 : i32
    %c0_i32_0 = arith.constant 0 : i32
    %c0_i32_1 = arith.constant 0 : i32
    return %c0_i32, %c0_i32_0 : i32, i32
  }
  func.func @transform_6(%arg0: i32, %arg1: i32) -> (i32, i32, i32, i32) {
    %c0_i32 = arith.constant 0 : i32
    %c0_i32_0 = arith.constant 0 : i32
    %c0_i32_1 = arith.constant 0 : i32
    return %arg0, %arg1, %c0_i32, %c0_i32_0 : i32, i32, i32, i32
  }
}

</mosaic_0001>

<llo_original>
// kernel: tpu_custom_call.1
$region0: #{tpu_custom_call.1}
  #allocation0 [shape = 'u32[]', space=smem, size = 0x4, offset = 0x4, fixed_abs, tag = 'smem constant byte address 0x4 - core index']
  #allocation1 [shape = 'u32[144,128]{1,0:T(1,128)}', space=vmem, size = 0x12000, scoped, tag = 'internal scratch']
  %s0 = inlined_call_operand.vmem [shape: f32[2,18,18,4], index: 0, kind: input, shape index: {}]
  %s1 = inlined_call_operand.vmem [shape: f32[2,2,2,18,4], index: 1, kind: input, shape index: {}]
  %s2 = inlined_call_operand.vmem [shape: f32[9,4], index: 2, kind: input, shape index: {}]
  %s3 = inlined_call_operand.vmem [shape: f32[1,4], index: 3, kind: input, shape index: {}]
  %s4 = inlined_call_operand.vmem [shape: f32[4,8], index: 4, kind: input, shape index: {}]
  %s5 = inlined_call_operand.vmem [shape: f32[1,8], index: 5, kind: input, shape index: {}]
  %s6 = inlined_call_operand.vmem [shape: f32[2,16,16,8], index: 6, kind: output, shape index: {}]
  %s7 = sld [smem:[#allocation0]]
  $region57: #{tpu_custom_call.1} parent=0
    _
  %s9 = ssub.s32 1, %s7
  %s10 = scalar_select 0, %s9, %s7
  loop: start=0, step=1, limit=6
  $region2: #{tpu_custom_call.1} parent=0 // loop_pre_header
    _
  $region3: #{tpu_custom_call.1} parent=0 // loop_header
    %s12 = sphi 0, %s16
    %p13 = scmp.ge.s32.totalorder %s12, 6
    %s19 = sphi 0, %s31
    %s20 = sphi 0, %s27
    %s21 = sphi 0, %s19
    %s22 = sphi 0, %s20
    %s23 = sphi 0, %s21
    %s24 = sphi 0, %s22
    %s36 = sphi 0, %s38
    %s39 = sphi 0, %s36
    %s40 = sphi 0, %s39
    %s56 = sphi 0, %s40
    %s64 = sphi 0, %s66
    %s67 = sphi 0, %s64
    %s68 = sphi 0, %s67
    %s84 = sphi 0, %s68
    %s88 = sphi 0, %s88
    %s90 = sphi 0, %s88
    %s91 = sphi 0, %s90
    %s105 = sphi 0, %s91
    %s109 = sphi 0, %s109
    %s111 = sphi 0, %s109
    %s112 = sphi 0, %s111
    %s126 = sphi 0, %s112
    %s130 = sphi 0, %s130
    %s132 = sphi 0, %s130
    %s133 = sphi 0, %s132
    %s147 = sphi 0, %s133
    %s151 = sphi 0, %s151
    %s153 = sphi 0, %s151
    %s154 = sphi 0, %s153
    %s168 = sphi 0, %s154
    %s176 = sphi 0, %s178
    %s179 = sphi 0, %s176
    %s180 = sphi 0, %s179
    %s196 = sphi 0, %s180
  $region4: #{tpu_custom_call.1} parent=0 // loop_header_branch
    %15 = sbr.rel (%p13) target = $region8
  $region5: #{tpu_custom_call.1} parent=0 // loop_body
    %s17 = ssub.s32 %s12, 1
    %s18 = ssub.s32 %s12, 2
    %s25 = sadd.s32 1, %s20
    %p26 = scmp.ge.s32.totalorder %s25, 2
    %s27 = scalar_select %p26, 0, %s25
    %s28 = sadd.s32 1, %s19
    %s29 = scalar_select %p26, %s28, %s19
    %p30 = scmp.ge.s32.totalorder %s29, 2
    %s31 = scalar_select %p30, 0, %s29
    %s32 = ssub.s32 %s19, %s31
    %s33 = ssub.s32 %s20, %s27
    %s34 = sor.u32 %s32, %s33
    %p35 = scmp.eq.s32.totalorder %s34, 0
    %s37 = sadd.s32 %s36, 1
    %s38 = scalar_select %p35, %s36, %s37
    %p41 = pneg %p35
    %p42 = scmp.eq.s32.totalorder %s12, 3
    %p43 = por %p41, %p42
    %p44 = scmp.ne.s32.totalorder %s36, %s39
    %p45 = scmp.eq.s32.totalorder %s12, 0
    %p46 = por %p44, %p45
    %p47 = scmp.ne.s32.totalorder %s36, %s39
    %p48 = scmp.eq.s32.totalorder %s17, 3
    %p49 = por %p47, %p48
    %p50 = scmp.ne.s32.totalorder %s39, %s40
    %p51 = scmp.eq.s32.totalorder %s17, 0
    %p52 = por %p50, %p51
    %p53 = scmp.ne.s32.totalorder %s39, %s40
    %p54 = scmp.eq.s32.totalorder %s18, 3
    %p55 = por %p53, %p54
    %p57 = scmp.ne.s32.totalorder %s40, %s56
    %p58 = scmp.eq.s32.totalorder %s18, 0
    %p59 = por %p57, %p58
    %s60 = ssub.s32 %s19, %s31
    %s61 = ssub.s32 %s20, %s27
    %s62 = sor.u32 %s60, %s61
    %p63 = scmp.eq.s32.totalorder %s62, 0
    %s65 = sadd.s32 %s64, 1
    %s66 = scalar_select %p63, %s64, %s65
    %p69 = pneg %p63
    %p70 = scmp.eq.s32.totalorder %s12, 3
    %p71 = por %p69, %p70
    %p72 = scmp.ne.s32.totalorder %s64, %s67
    %p73 = scmp.eq.s32.totalorder %s12, 0
    %p74 = por %p72, %p73
    %p75 = scmp.ne.s32.totalorder %s64, %s67
    %p76 = scmp.eq.s32.totalorder %s17, 3
    %p77 = por %p75, %p76
    %p78 = scmp.ne.s32.totalorder %s67, %s68
    %p79 = scmp.eq.s32.totalorder %s17, 0
    %p80 = por %p78, %p79
    %p81 = scmp.ne.s32.totalorder %s67, %s68
    %p82 = scmp.eq.s32.totalorder %s18, 3
    %p83 = por %p81, %p82
    %p85 = scmp.ne.s32.totalorder %s68, %s84
    %p86 = scmp.eq.s32.totalorder %s18, 0
    %p87 = por %p85, %p86
    %s89 = sadd.s32 %s88, 1
    %p92 = scmp.eq.s32.totalorder %s12, 3
    %p93 = scmp.ne.s32.totalorder %s88, %s90
    %p94 = scmp.eq.s32.totalorder %s12, 0
    %p95 = por %p93, %p94
    %p96 = scmp.ne.s32.totalorder %s88, %s90
    %p97 = scmp.eq.s32.totalorder %s17, 3
    %p98 = por %p96, %p97
    %p99 = scmp.ne.s32.totalorder %s90, %s91
    %p100 = scmp.eq.s32.totalorder %s17, 0
    %p101 = por %p99, %p100
    %p102 = scmp.ne.s32.totalorder %s90, %s91
    %p103 = scmp.eq.s32.totalorder %s18, 3
    %p104 = por %p102, %p103
    %p106 = scmp.ne.s32.totalorder %s91, %s105
    %p107 = scmp.eq.s32.totalorder %s18, 0
    %p108 = por %p106, %p107
    %s110 = sadd.s32 %s109, 1
    %p113 = scmp.eq.s32.totalorder %s12, 3
    %p114 = scmp.ne.s32.totalorder %s109, %s111
    %p115 = scmp.eq.s32.totalorder %s12, 0
    %p116 = por %p114, %p115
    %p117 = scmp.ne.s32.totalorder %s109, %s111
    %p118 = scmp.eq.s32.totalorder %s17, 3
    %p119 = por %p117, %p118
    %p120 = scmp.ne.s32.totalorder %s111, %s112
    %p121 = scmp.eq.s32.totalorder %s17, 0
    %p122 = por %p120, %p121
    %p123 = scmp.ne.s32.totalorder %s111, %s112
    %p124 = scmp.eq.s32.totalorder %s18, 3
    %p125 = por %p123, %p124
    %p127 = scmp.ne.s32.totalorder %s112, %s126
    %p128 = scmp.eq.s32.totalorder %s18, 0
    %p129 = por %p127, %p128
    %s131 = sadd.s32 %s130, 1
    %p134 = scmp.eq.s32.totalorder %s12, 3
    %p135 = scmp.ne.s32.totalorder %s130, %s132
    %p136 = scmp.eq.s32.totalorder %s12, 0
    %p137 = por %p135, %p136
    %p138 = scmp.ne.s32.totalorder %s130, %s132
    %p139 = scmp.eq.s32.totalorder %s17, 3
    %p140 = por %p138, %p139
    %p141 = scmp.ne.s32.totalorder %s132, %s133
    %p142 = scmp.eq.s32.totalorder %s17, 0
    %p143 = por %p141, %p142
    %p144 = scmp.ne.s32.totalorder %s132, %s133
    %p145 = scmp.eq.s32.totalorder %s18, 3
    %p146 = por %p144, %p145
    %p148 = scmp.ne.s32.totalorder %s133, %s147
    %p149 = scmp.eq.s32.totalorder %s18, 0
    %p150 = por %p148, %p149
    %s152 = sadd.s32 %s151, 1
    %p155 = scmp.eq.s32.totalorder %s12, 3
    %p156 = scmp.ne.s32.totalorder %s151, %s153
    %p157 = scmp.eq.s32.totalorder %s12, 0
    %p158 = por %p156, %p157
    %p159 = scmp.ne.s32.totalorder %s151, %s153
    %p160 = scmp.eq.s32.totalorder %s17, 3
    %p161 = por %p159, %p160
    %p162 = scmp.ne.s32.totalorder %s153, %s154
    %p163 = scmp.eq.s32.totalorder %s17, 0
    %p164 = por %p162, %p163
    %p165 = scmp.ne.s32.totalorder %s153, %s154
    %p166 = scmp.eq.s32.totalorder %s18, 3
    %p167 = por %p165, %p166
    %p169 = scmp.ne.s32.totalorder %s154, %s168
    %p170 = scmp.eq.s32.totalorder %s18, 0
    %p171 = por %p169, %p170
    %s172 = ssub.s32 %s19, %s31
    %s173 = ssub.s32 %s20, %s27
    %s174 = sor.u32 %s172, %s173
    %p175 = scmp.eq.s32.totalorder %s174, 0
    %s177 = sadd.s32 %s176, 1
    %s178 = scalar_select %p175, %s176, %s177
    %p181 = pneg %p175
    %p182 = scmp.eq.s32.totalorder %s12, 3
    %p183 = por %p181, %p182
    %p184 = scmp.ne.s32.totalorder %s176, %s179
    %p185 = scmp.eq.s32.totalorder %s12, 0
    %p186 = por %p184, %p185
    %p187 = scmp.ne.s32.totalorder %s176, %s179
    %p188 = scmp.eq.s32.totalorder %s17, 3
    %p189 = por %p187, %p188
    %p190 = scmp.ne.s32.totalorder %s179, %s180
    %p191 = scmp.eq.s32.totalorder %s17, 0
    %p192 = por %p190, %p191
    %p193 = scmp.ne.s32.totalorder %s179, %s180
    %p194 = scmp.eq.s32.totalorder %s18, 3
    %p195 = por %p193, %p194
    %p197 = scmp.ne.s32.totalorder %s180, %s196
    %p198 = scmp.eq.s32.totalorder %s18, 0
    %p199 = por %p197, %p198
    %p200 = scmp.le.s32.totalorder 1, %s12
    %p201 = scmp.lt.s32.totalorder %s12, 5
    %p202 = pnand %p200, %p201
    %p203 = pneg %p202
    // Predicated region
    $region9: #{tpu_custom_call.1} parent=5 // pred_check
      _
    $region10: #{tpu_custom_call.1} parent=5 // pred_check_branch
      %205 = sbr.rel (%p202) target = $region12
    $region11: #{tpu_custom_call.1} parent=5 // pred_region
      %s206 = ssub.s32 %s12, 1
      // Predicated region
      $region13: #{tpu_custom_call.1} parent=11 // pred_check
        %p207 = pneg %p101
      $region14: #{tpu_custom_call.1} parent=11 // pred_check_branch
        %209 = sbr.rel (%p207) target = $region16
      $region15: #{tpu_custom_call.1} parent=11 // pred_region
        _
      $region16: #{tpu_custom_call.1} parent=11 // pred_fallthru
        _
      // Predicated region
      $region17: #{tpu_custom_call.1} parent=11 // pred_check
        %p210 = pneg %p122
      $region18: #{tpu_custom_call.1} parent=11 // pred_check_branch
        %212 = sbr.rel (%p210) target = $region20
      $region19: #{tpu_custom_call.1} parent=11 // pred_region
        _
      $region20: #{tpu_custom_call.1} parent=11 // pred_fallthru
        _
      // Predicated region
      $region21: #{tpu_custom_call.1} parent=11 // pred_check
        %p213 = pneg %p143
      $region22: #{tpu_custom_call.1} parent=11 // pred_check_branch
        %215 = sbr.rel (%p213) target = $region24
      $region23: #{tpu_custom_call.1} parent=11 // pred_region
        _
      $region24: #{tpu_custom_call.1} parent=11 // pred_fallthru
        _
      // Predicated region
      $region25: #{tpu_custom_call.1} parent=11 // pred_check
        %p216 = pneg %p164
      $region26: #{tpu_custom_call.1} parent=11 // pred_check_branch
        %218 = sbr.rel (%p216) target = $region28
      $region27: #{tpu_custom_call.1} parent=11 // pred_region
        _
      $region28: #{tpu_custom_call.1} parent=11 // pred_fallthru
        _
    $region12: #{tpu_custom_call.1} parent=5 // pred_fallthru
      _
    %p219 = scmp.lt.s32.totalorder %s12, 4
    // Predicated region
    $region29: #{tpu_custom_call.1} parent=5 // pred_check
      %p220 = pneg %p219
    $region30: #{tpu_custom_call.1} parent=5 // pred_check_branch
      %222 = sbr.rel (%p220) target = $region32
    $region31: #{tpu_custom_call.1} parent=5 // pred_region
      // Predicated region
      $region33: #{tpu_custom_call.1} parent=31 // pred_check
        %p223 = pneg %p46
      $region34: #{tpu_custom_call.1} parent=31 // pred_check_branch
        %225 = sbr.rel (%p223) target = $region36
      $region35: #{tpu_custom_call.1} parent=31 // pred_region
        %s226 = smul.u32 8, %s20
        %s227 = ssub.s32 18, %s226
        %p228 = scmp.lt.s32.totalorder %s227, 8
        %s229 = scalar_select %p228, %s227, 8
        %s230 = smul.u32 128, %s229
        %s231 = smul.u32 %s230, 3
        %p232 = scmp.lt.s32.totalorder %s19, 1
        %s233 = scalar_select %p232, %s19, 1
        %p234 = scmp.lt.s32.totalorder %s226, 17
        %s235 = scalar_select %p234, %s226, 17
        %s236 = smul.addr %s235, 3
        %s237 = smul.addr %s233, 54
        %s238 = sadd.s32 %s236, %s237
        %s239 = smul.addr %s238, 8
        %s240 = scalar_lea.vmem %s0, %s239
        %s241 = smul.u32 8, %s20
        %s242 = ssub.s32 18, %s241
        %p243 = scmp.lt.s32.totalorder %s242, 8
        %s244 = scalar_select %p243, %s242, 8
        %s245 = smul.u32 128, %s244
        %s246 = smul.u32 %s245, 3
      $region36: #{tpu_custom_call.1} parent=31 // pred_fallthru
        _
      // Predicated region
      $region37: #{tpu_custom_call.1} parent=31 // pred_check
        %p247 = pneg %p74
      $region38: #{tpu_custom_call.1} parent=31 // pred_check_branch
        %249 = sbr.rel (%p247) target = $region40
      $region39: #{tpu_custom_call.1} parent=31 // pred_region
        %p250 = scmp.lt.s32.totalorder %s19, 1
        %s251 = scalar_select %p250, %s19, 1
        %p252 = scmp.lt.s32.totalorder %s20, 1
        %s253 = scalar_select %p252, %s20, 1
        %s254 = smul.addr %s253, 6
        %s255 = smul.addr %s251, 12
        %s256 = sadd.s32 %s254, %s255
        %s257 = smul.addr %s256, 8
        %s258 = scalar_lea.vmem %s1, %s257
      $region40: #{tpu_custom_call.1} parent=31 // pred_fallthru
        _
    $region32: #{tpu_custom_call.1} parent=5 // pred_fallthru
      _
    %p259 = scmp.le.s32.totalorder 1, %s12
    %p260 = scmp.lt.s32.totalorder %s12, 5
    %p261 = pnand %p259, %p260
    %p262 = pneg %p261
    // Predicated region
    $region41: #{tpu_custom_call.1} parent=5 // pred_check
      _
    $region42: #{tpu_custom_call.1} parent=5 // pred_check_branch
      %264 = sbr.rel (%p261) target = $region44
    $region43: #{tpu_custom_call.1} parent=5 // pred_region
      %s265 = ssub.s32 %s12, 1
      %s266 = smul.u32 8, %s22
      %s267 = ssub.s32 18, %s266
      %p268 = scmp.lt.s32.totalorder %s267, 8
      %s269 = scalar_select %p268, %s267, 8
      %s270 = smul.u32 128, %s269
      %s271 = smul.u32 %s270, 3
      %p272 = scmp.lt.s32.totalorder %s21, 1
      %s273 = scalar_select %p272, %s21, 1
      %p274 = scmp.lt.s32.totalorder %s266, 17
      %s275 = scalar_select %p274, %s266, 17
      %s276 = smul.addr %s275, 3
      %s277 = smul.addr %s273, 54
      %s278 = sadd.s32 %s276, %s277
      %s279 = smul.addr %s278, 8
      %s280 = scalar_lea.vmem %s0, %s279
      %p281 = pneg %p52
      %p282 = pneg %p49
      %p283 = scmp.lt.s32.totalorder %s21, 1
      %s284 = scalar_select %p283, %s21, 1
      %p285 = scmp.lt.s32.totalorder %s22, 1
      %s286 = scalar_select %p285, %s22, 1
      %s287 = smul.addr %s286, 6
      %s288 = smul.addr %s284, 12
      %s289 = sadd.s32 %s287, %s288
      %s290 = smul.addr %s289, 8
      %s291 = scalar_lea.vmem %s1, %s290
      %p292 = pneg %p80
      %p293 = pneg %p77
      %p294 = pneg %p101
      %p295 = pneg %p98
      %p296 = pneg %p122
      %p297 = pneg %p119
      %p298 = pneg %p143
      %p299 = pneg %p140
      %p300 = pneg %p164
      %p301 = pneg %p161
      %p302 = pneg %p192
      %p303 = pneg %p189
      %s304 = smul.u32 8, %s22
      %p305 = scmp.lt.s32.totalorder %s21, 1
      %s306 = scalar_select %p305, %s21, 1
      %p307 = scmp.lt.s32.totalorder %s304, 15
      %s308 = scalar_select %p307, %s304, 15
      %s309 = smul.addr %s308, 2
      %s310 = smul.addr %s306, 32
      %s311 = sadd.s32 %s309, %s310
      %s312 = smul.addr %s311, 8
      %s313 = scalar_lea.vmem %s6, %s312
      %s314 = smul.u32 8, %s22
      %s315 = ssub.s32 18, %s314
      %p316 = scmp.lt.s32.totalorder %s315, 8
      %s317 = scalar_select %p316, %s315, 8
      %s318 = smul.u32 128, %s317
      %s319 = smul.u32 %s318, 3
      %p320 = scmp.lt.s32.totalorder %s21, 1
      %s321 = scalar_select %p320, %s21, 1
      %p322 = scmp.lt.s32.totalorder %s314, 17
      %s323 = scalar_select %p322, %s314, 17
      %s324 = smul.addr %s323, 3
      %s325 = smul.addr %s321, 54
      %s326 = sadd.s32 %s324, %s325
      %s327 = smul.addr %s326, 8
      %s328 = scalar_lea.vmem %s0, %s327
      %s329 = smul.u32 8, %s22
      %s330 = ssub.s32 18, %s329
      %p331 = scmp.lt.s32.totalorder %s330, 8
      %s332 = scalar_select %p331, %s330, 8
      %s333 = smul.u32 128, %s332
      %s334 = smul.u32 %s333, 3
      %p335 = scmp.lt.s32.totalorder %s21, 1
      %s336 = scalar_select %p335, %s21, 1
      %p337 = scmp.lt.s32.totalorder %s22, 1
      %s338 = scalar_select %p337, %s22, 1
      %s339 = smul.addr %s338, 6
      %s340 = smul.addr %s336, 12
      %s341 = sadd.s32 %s339, %s340
      %s342 = smul.addr %s341, 8
      %s343 = scalar_lea.vmem %s1, %s342
      %s344 = smul.u32 8, %s22
      %p345 = scmp.lt.s32.totalorder %s21, 1
      %s346 = scalar_select %p345, %s21, 1
      %p347 = scmp.lt.s32.totalorder %s344, 15
      %s348 = scalar_select %p347, %s344, 15
      %s349 = smul.addr %s348, 2
      %s350 = smul.addr %s346, 32
      %s351 = sadd.s32 %s349, %s350
      %s352 = smul.addr %s351, 8
      %s353 = scalar_lea.vmem %s6, %s352
      %s354 = smul.u32 8, %s22
      %v355 = vld [vmem:[%s2] sm:$0xff]
      %v356 = vld [vmem:[%s2 + $0x8] sm:$0x1]
      %v357 = vld [vmem:[%s3] sm:$0x1]
      %v358 = vld [vmem:[%s5] sm:$0x1]
      %v359 = vld [vmem:[%s328] sm:$0xff]
      %v360 = vld [vmem:[%s328 + $0x8] sm:$0xff]
      %v361 = vld [vmem:[%s328 + $0x10] sm:$0x3]
      %v362 = vld [vmem:[%s328 + $0x18] sm:$0xff]
      %v363 = vld [vmem:[%s328 + $0x20] sm:$0xff]
      %v364 = vld [vmem:[%s328 + $0x28] sm:$0x3]
      %v365 = vld [vmem:[%s328 + $0x30] sm:$0xff]
      %v366 = vld [vmem:[%s328 + $0x38] sm:$0xff]
      %v367 = vld [vmem:[%s328 + $0x40] sm:$0x3]
      %v368 = vld [vmem:[%s328 + $0x48] sm:$0xff]
      %v369 = vld [vmem:[%s328 + $0x50] sm:$0xff]
      %v370 = vld [vmem:[%s328 + $0x58] sm:$0x3]
      %v371 = vld [vmem:[%s328 + $0x60] sm:$0xff]
      %v372 = vld [vmem:[%s328 + $0x68] sm:$0xff]
      %v373 = vld [vmem:[%s328 + $0x70] sm:$0x3]
      %v374 = vld [vmem:[%s328 + $0x78] sm:$0xff]
      %v375 = vld [vmem:[%s328 + $0x80] sm:$0xff]
      %v376 = vld [vmem:[%s328 + $0x88] sm:$0x3]
      %v377 = vld [vmem:[%s328 + $0x90] sm:$0xff]
      %v378 = vld [vmem:[%s328 + $0x98] sm:$0xff]
      %v379 = vld [vmem:[%s328 + $0xa0] sm:$0x3]
      %v380 = vld [vmem:[%s328 + $0xa8] sm:$0xff]
      %v381 = vld [vmem:[%s328 + $0xb0] sm:$0xff]
      %v382 = vld [vmem:[%s328 + $0xb8] sm:$0x3]
      %v383 = vld [vmem:[%s343] sm:$0xff]
      %v384 = vld [vmem:[%s343 + $0x8] sm:$0xff]
      %v385 = vld [vmem:[%s343 + $0x10] sm:$0x3]
      %v386 = vld [vmem:[%s343 + $0x18] sm:$0xff]
      %v387 = vld [vmem:[%s343 + $0x20] sm:$0xff]
      %v388 = vld [vmem:[%s343 + $0x28] sm:$0x3]
      %v390 = vlaneseq
      %v391 = vshrl.u32 %v390, 7
      %v392 = vsub.s32 0, %v391
      %v393 = vrot.slane %v357, %v392
      %v395 = vadd.f32 %v393, 0.0
      %v396 = vlaneseq
      %v397 = vshrl.u32 %v396, 7
      %v398 = vsub.s32 0, %v397
      %v399 = vrot.slane %v355, %v398
      %v400 = vmul.f32 %v359, %v399
      %v401 = vmul.f32 %v360, %v399
      %v402 = vmul.f32 %v362, %v399
      %v403 = vmul.f32 %v363, %v399
      %v404 = vmul.f32 %v365, %v399
      %v405 = vmul.f32 %v366, %v399
      %v406 = vmul.f32 %v368, %v399
      %v407 = vmul.f32 %v369, %v399
      %v408 = vmul.f32 %v371, %v399
      %v409 = vmul.f32 %v372, %v399
      %v410 = vmul.f32 %v374, %v399
      %v411 = vmul.f32 %v375, %v399
      %v412 = vmul.f32 %v377, %v399
      %v413 = vmul.f32 %v378, %v399
      %v414 = vmul.f32 %v380, %v399
      %v415 = vmul.f32 %v381, %v399
      %v416 = vadd.f32 %v395, %v400
      %v417 = vadd.f32 %v395, %v401
      %v418 = vadd.f32 %v395, %v402
      %v419 = vadd.f32 %v395, %v403
      %v420 = vadd.f32 %v395, %v404
      %v421 = vadd.f32 %v395, %v405
      %v422 = vadd.f32 %v395, %v406
      %v423 = vadd.f32 %v395, %v407
      %v424 = vadd.f32 %v395, %v408
      %v425 = vadd.f32 %v395, %v409
      %v426 = vadd.f32 %v395, %v410
      %v427 = vadd.f32 %v395, %v411
      %v428 = vadd.f32 %v395, %v412
      %v429 = vadd.f32 %v395, %v413
      %v430 = vadd.f32 %v395, %v414
      %v431 = vadd.f32 %v395, %v415
      %v432 = vlaneseq
      %v433 = vshrl.u32 %v432, 7
      %v434 = vsub.s32 1, %v433
      %v435 = vrot.slane %v355, %v434
      %v436 = vmul.f32 %v359, %v435
      %v437 = vmul.f32 %v360, %v435
      %v438 = vmul.f32 %v361, %v435
      %v439 = vmul.f32 %v362, %v435
      %v440 = vmul.f32 %v363, %v435
      %v441 = vmul.f32 %v364, %v435
      %v442 = vmul.f32 %v365, %v435
      %v443 = vmul.f32 %v366, %v435
      %v444 = vmul.f32 %v367, %v435
      %v445 = vmul.f32 %v368, %v435
      %v446 = vmul.f32 %v369, %v435
      %v447 = vmul.f32 %v370, %v435
      %v448 = vmul.f32 %v371, %v435
      %v449 = vmul.f32 %v372, %v435
      %v450 = vmul.f32 %v373, %v435
      %v451 = vmul.f32 %v374, %v435
      %v452 = vmul.f32 %v375, %v435
      %v453 = vmul.f32 %v376, %v435
      %v454 = vmul.f32 %v377, %v435
      %v455 = vmul.f32 %v378, %v435
      %v456 = vmul.f32 %v379, %v435
      %v457 = vmul.f32 %v380, %v435
      %v458 = vmul.f32 %v381, %v435
      %v459 = vmul.f32 %v382, %v435
      %vm484 = vcmask 1046528
      %v485 = vrot.slane %v436, 1
      %v486 = vrot.slane %v437, 1
      %v487 = vsel %vm484, %v485, %v486
      %v488 = vrot.slane %v438, 1
      %v489 = vsel %vm484, %v486, %v488
      %v490 = vrot.slane %v439, 1
      %v491 = vrot.slane %v440, 1
      %v492 = vsel %vm484, %v490, %v491
      %v493 = vrot.slane %v441, 1
      %v494 = vsel %vm484, %v491, %v493
      %v495 = vrot.slane %v442, 1
      %v496 = vrot.slane %v443, 1
      %v497 = vsel %vm484, %v495, %v496
      %v498 = vrot.slane %v444, 1
      %v499 = vsel %vm484, %v496, %v498
      %v500 = vrot.slane %v445, 1
      %v501 = vrot.slane %v446, 1
      %v502 = vsel %vm484, %v500, %v501
      %v503 = vrot.slane %v447, 1
      %v504 = vsel %vm484, %v501, %v503
      %v505 = vrot.slane %v448, 1
      %v506 = vrot.slane %v449, 1
      %v507 = vsel %vm484, %v505, %v506
      %v508 = vrot.slane %v450, 1
      %v509 = vsel %vm484, %v506, %v508
      %v510 = vrot.slane %v451, 1
      %v511 = vrot.slane %v452, 1
      %v512 = vsel %vm484, %v510, %v511
      %v513 = vrot.slane %v453, 1
      %v514 = vsel %vm484, %v511, %v513
      %v515 = vrot.slane %v454, 1
      %v516 = vrot.slane %v455, 1
      %v517 = vsel %vm484, %v515, %v516
      %v518 = vrot.slane %v456, 1
      %v519 = vsel %vm484, %v516, %v518
      %v520 = vrot.slane %v457, 1
      %v521 = vrot.slane %v458, 1
      %v522 = vsel %vm484, %v520, %v521
      %v523 = vrot.slane %v459, 1
      %v524 = vsel %vm484, %v521, %v523
      %v541 = vadd.f32 %v416, %v487
      %v542 = vadd.f32 %v417, %v489
      %v543 = vadd.f32 %v418, %v492
      %v544 = vadd.f32 %v419, %v494
      %v545 = vadd.f32 %v420, %v497
      %v546 = vadd.f32 %v421, %v499
      %v547 = vadd.f32 %v422, %v502
      %v548 = vadd.f32 %v423, %v504
      %v549 = vadd.f32 %v424, %v507
      %v550 = vadd.f32 %v425, %v509
      %v551 = vadd.f32 %v426, %v512
      %v552 = vadd.f32 %v427, %v514
      %v553 = vadd.f32 %v428, %v517
      %v554 = vadd.f32 %v429, %v519
      %v555 = vadd.f32 %v430, %v522
      %v556 = vadd.f32 %v431, %v524
      %v557 = vlaneseq
      %v558 = vshrl.u32 %v557, 7
      %v559 = vsub.s32 2, %v558
      %v560 = vrot.slane %v355, %v559
      %v561 = vmul.f32 %v359, %v560
      %v562 = vmul.f32 %v360, %v560
      %v563 = vmul.f32 %v361, %v560
      %v564 = vmul.f32 %v362, %v560
      %v565 = vmul.f32 %v363, %v560
      %v566 = vmul.f32 %v364, %v560
      %v567 = vmul.f32 %v365, %v560
      %v568 = vmul.f32 %v366, %v560
      %v569 = vmul.f32 %v367, %v560
      %v570 = vmul.f32 %v368, %v560
      %v571 = vmul.f32 %v369, %v560
      %v572 = vmul.f32 %v370, %v560
      %v573 = vmul.f32 %v371, %v560
      %v574 = vmul.f32 %v372, %v560
      %v575 = vmul.f32 %v373, %v560
      %v576 = vmul.f32 %v374, %v560
      %v577 = vmul.f32 %v375, %v560
      %v578 = vmul.f32 %v376, %v560
      %v579 = vmul.f32 %v377, %v560
      %v580 = vmul.f32 %v378, %v560
      %v581 = vmul.f32 %v379, %v560
      %v582 = vmul.f32 %v380, %v560
      %v583 = vmul.f32 %v381, %v560
      %v584 = vmul.f32 %v382, %v560
      %vm609 = vcmask 1045504
      %v610 = vrot.slane %v561, 2
      %v611 = vrot.slane %v562, 2
      %v612 = vsel %vm609, %v610, %v611
      %v613 = vrot.slane %v563, 2
      %v614 = vsel %vm609, %v611, %v613
      %v615 = vrot.slane %v564, 2
      %v616 = vrot.slane %v565, 2
      %v617 = vsel %vm609, %v615, %v616
      %v618 = vrot.slane %v566, 2
      %v619 = vsel %vm609, %v616, %v618
      %v620 = vrot.slane %v567, 2
      %v621 = vrot.slane %v568, 2
      %v622 = vsel %vm609, %v620, %v621
      %v623 = vrot.slane %v569, 2
      %v624 = vsel %vm609, %v621, %v623
      %v625 = vrot.slane %v570, 2
      %v626 = vrot.slane %v571, 2
      %v627 = vsel %vm609, %v625, %v626
      %v628 = vrot.slane %v572, 2
      %v629 = vsel %vm609, %v626, %v628
      %v630 = vrot.slane %v573, 2
      %v631 = vrot.slane %v574, 2
      %v632 = vsel %vm609, %v630, %v631
      %v633 = vrot.slane %v575, 2
      %v634 = vsel %vm609, %v631, %v633
      %v635 = vrot.slane %v576, 2
      %v636 = vrot.slane %v577, 2
      %v637 = vsel %vm609, %v635, %v636
      %v638 = vrot.slane %v578, 2
      %v639 = vsel %vm609, %v636, %v638
      %v640 = vrot.slane %v579, 2
      %v641 = vrot.slane %v580, 2
      %v642 = vsel %vm609, %v640, %v641
      %v643 = vrot.slane %v581, 2
      %v644 = vsel %vm609, %v641, %v643
      %v645 = vrot.slane %v582, 2
      %v646 = vrot.slane %v583, 2
      %v647 = vsel %vm609, %v645, %v646
      %v648 = vrot.slane %v584, 2
      %v649 = vsel %vm609, %v646, %v648
      %v666 = vadd.f32 %v541, %v612
      %v667 = vadd.f32 %v542, %v614
      %v668 = vadd.f32 %v543, %v617
      %v669 = vadd.f32 %v544, %v619
      %v670 = vadd.f32 %v545, %v622
      %v671 = vadd.f32 %v546, %v624
      %v672 = vadd.f32 %v547, %v627
      %v673 = vadd.f32 %v548, %v629
      %v674 = vadd.f32 %v549, %v632
      %v675 = vadd.f32 %v550, %v634
      %v676 = vadd.f32 %v551, %v637
      %v677 = vadd.f32 %v552, %v639
      %v678 = vadd.f32 %v553, %v642
      %v679 = vadd.f32 %v554, %v644
      %v680 = vadd.f32 %v555, %v647
      %v681 = vadd.f32 %v556, %v649
      %v682 = vlaneseq
      %v683 = vshrl.u32 %v682, 7
      %v684 = vsub.s32 3, %v683
      %v685 = vrot.slane %v355, %v684
      %v686 = vmul.f32 %v362, %v685
      %v687 = vmul.f32 %v363, %v685
      %v688 = vmul.f32 %v365, %v685
      %v689 = vmul.f32 %v366, %v685
      %v690 = vmul.f32 %v368, %v685
      %v691 = vmul.f32 %v369, %v685
      %v692 = vmul.f32 %v371, %v685
      %v693 = vmul.f32 %v372, %v685
      %v694 = vmul.f32 %v374, %v685
      %v695 = vmul.f32 %v375, %v685
      %v696 = vmul.f32 %v377, %v685
      %v697 = vmul.f32 %v378, %v685
      %v698 = vmul.f32 %v380, %v685
      %v699 = vmul.f32 %v381, %v685
      %v700 = vmul.f32 %v383, %v685
      %v701 = vmul.f32 %v384, %v685
      %v702 = vadd.f32 %v666, %v686
      %v703 = vadd.f32 %v667, %v687
      %v704 = vadd.f32 %v668, %v688
      %v705 = vadd.f32 %v669, %v689
      %v706 = vadd.f32 %v670, %v690
      %v707 = vadd.f32 %v671, %v691
      %v708 = vadd.f32 %v672, %v692
      %v709 = vadd.f32 %v673, %v693
      %v710 = vadd.f32 %v674, %v694
      %v711 = vadd.f32 %v675, %v695
      %v712 = vadd.f32 %v676, %v696
      %v713 = vadd.f32 %v677, %v697
      %v714 = vadd.f32 %v678, %v698
      %v715 = vadd.f32 %v679, %v699
      %v716 = vadd.f32 %v680, %v700
      %v717 = vadd.f32 %v681, %v701
      %v718 = vlaneseq
      %v719 = vshrl.u32 %v718, 7
      %v720 = vsub.s32 4, %v719
      %v721 = vrot.slane %v355, %v720
      %v722 = vmul.f32 %v362, %v721
      %v723 = vmul.f32 %v363, %v721
      %v724 = vmul.f32 %v364, %v721
      %v725 = vmul.f32 %v365, %v721
      %v726 = vmul.f32 %v366, %v721
      %v727 = vmul.f32 %v367, %v721
      %v728 = vmul.f32 %v368, %v721
      %v729 = vmul.f32 %v369, %v721
      %v730 = vmul.f32 %v370, %v721
      %v731 = vmul.f32 %v371, %v721
      %v732 = vmul.f32 %v372, %v721
      %v733 = vmul.f32 %v373, %v721
      %v734 = vmul.f32 %v374, %v721
      %v735 = vmul.f32 %v375, %v721
      %v736 = vmul.f32 %v376, %v721
      %v737 = vmul.f32 %v377, %v721
      %v738 = vmul.f32 %v378, %v721
      %v739 = vmul.f32 %v379, %v721
      %v740 = vmul.f32 %v380, %v721
      %v741 = vmul.f32 %v381, %v721
      %v742 = vmul.f32 %v382, %v721
      %v743 = vmul.f32 %v383, %v721
      %v744 = vmul.f32 %v384, %v721
      %v745 = vmul.f32 %v385, %v721
      %v770 = vrot.slane %v722, 1
      %v771 = vrot.slane %v723, 1
      %v772 = vsel %vm484, %v770, %v771
      %v773 = vrot.slane %v724, 1
      %v774 = vsel %vm484, %v771, %v773
      %v775 = vrot.slane %v725, 1
      %v776 = vrot.slane %v726, 1
      %v777 = vsel %vm484, %v775, %v776
      %v778 = vrot.slane %v727, 1
      %v779 = vsel %vm484, %v776, %v778
      %v780 = vrot.slane %v728, 1
      %v781 = vrot.slane %v729, 1
      %v782 = vsel %vm484, %v780, %v781
      %v783 = vrot.slane %v730, 1
      %v784 = vsel %vm484, %v781, %v783
      %v785 = vrot.slane %v731, 1
      %v786 = vrot.slane %v732, 1
      %v787 = vsel %vm484, %v785, %v786
      %v788 = vrot.slane %v733, 1
      %v789 = vsel %vm484, %v786, %v788
      %v790 = vrot.slane %v734, 1
      %v791 = vrot.slane %v735, 1
      %v792 = vsel %vm484, %v790, %v791
      %v793 = vrot.slane %v736, 1
      %v794 = vsel %vm484, %v791, %v793
      %v795 = vrot.slane %v737, 1
      %v796 = vrot.slane %v738, 1
      %v797 = vsel %vm484, %v795, %v796
      %v798 = vrot.slane %v739, 1
      %v799 = vsel %vm484, %v796, %v798
      %v800 = vrot.slane %v740, 1
      %v801 = vrot.slane %v741, 1
      %v802 = vsel %vm484, %v800, %v801
      %v803 = vrot.slane %v742, 1
      %v804 = vsel %vm484, %v801, %v803
      %v805 = vrot.slane %v743, 1
      %v806 = vrot.slane %v744, 1
      %v807 = vsel %vm484, %v805, %v806
      %v808 = vrot.slane %v745, 1
      %v809 = vsel %vm484, %v806, %v808
      %v826 = vadd.f32 %v702, %v772
      %v827 = vadd.f32 %v703, %v774
      %v828 = vadd.f32 %v704, %v777
      %v829 = vadd.f32 %v705, %v779
      %v830 = vadd.f32 %v706, %v782
      %v831 = vadd.f32 %v707, %v784
      %v832 = vadd.f32 %v708, %v787
      %v833 = vadd.f32 %v709, %v789
      %v834 = vadd.f32 %v710, %v792
      %v835 = vadd.f32 %v711, %v794
      %v836 = vadd.f32 %v712, %v797
      %v837 = vadd.f32 %v713, %v799
      %v838 = vadd.f32 %v714, %v802
      %v839 = vadd.f32 %v715, %v804
      %v840 = vadd.f32 %v716, %v807
      %v841 = vadd.f32 %v717, %v809
      %v842 = vlaneseq
      %v843 = vshrl.u32 %v842, 7
      %v844 = vsub.s32 5, %v843
      %v845 = vrot.slane %v355, %v844
      %v846 = vmul.f32 %v362, %v845
      %v847 = vmul.f32 %v363, %v845
      %v848 = vmul.f32 %v364, %v845
      %v849 = vmul.f32 %v365, %v845
      %v850 = vmul.f32 %v366, %v845
      %v851 = vmul.f32 %v367, %v845
      %v852 = vmul.f32 %v368, %v845
      %v853 = vmul.f32 %v369, %v845
      %v854 = vmul.f32 %v370, %v845
      %v855 = vmul.f32 %v371, %v845
      %v856 = vmul.f32 %v372, %v845
      %v857 = vmul.f32 %v373, %v845
      %v858 = vmul.f32 %v374, %v845
      %v859 = vmul.f32 %v375, %v845
      %v860 = vmul.f32 %v376, %v845
      %v861 = vmul.f32 %v377, %v845
      %v862 = vmul.f32 %v378, %v845
      %v863 = vmul.f32 %v379, %v845
      %v864 = vmul.f32 %v380, %v845
      %v865 = vmul.f32 %v381, %v845
      %v866 = vmul.f32 %v382, %v845
      %v867 = vmul.f32 %v383, %v845
      %v868 = vmul.f32 %v384, %v845
      %v869 = vmul.f32 %v385, %v845
      %v894 = vrot.slane %v846, 2
      %v895 = vrot.slane %v847, 2
      %v896 = vsel %vm609, %v894, %v895
      %v897 = vrot.slane %v848, 2
      %v898 = vsel %vm609, %v895, %v897
      %v899 = vrot.slane %v849, 2
      %v900 = vrot.slane %v850, 2
      %v901 = vsel %vm609, %v899, %v900
      %v902 = vrot.slane %v851, 2
      %v903 = vsel %vm609, %v900, %v902
      %v904 = vrot.slane %v852, 2
      %v905 = vrot.slane %v853, 2
      %v906 = vsel %vm609, %v904, %v905
      %v907 = vrot.slane %v854, 2
      %v908 = vsel %vm609, %v905, %v907
      %v909 = vrot.slane %v855, 2
      %v910 = vrot.slane %v856, 2
      %v911 = vsel %vm609, %v909, %v910
      %v912 = vrot.slane %v857, 2
      %v913 = vsel %vm609, %v910, %v912
      %v914 = vrot.slane %v858, 2
      %v915 = vrot.slane %v859, 2
      %v916 = vsel %vm609, %v914, %v915
      %v917 = vrot.slane %v860, 2
      %v918 = vsel %vm609, %v915, %v917
      %v919 = vrot.slane %v861, 2
      %v920 = vrot.slane %v862, 2
      %v921 = vsel %vm609, %v919, %v920
      %v922 = vrot.slane %v863, 2
      %v923 = vsel %vm609, %v920, %v922
      %v924 = vrot.slane %v864, 2
      %v925 = vrot.slane %v865, 2
      %v926 = vsel %vm609, %v924, %v925
      %v927 = vrot.slane %v866, 2
      %v928 = vsel %vm609, %v925, %v927
      %v929 = vrot.slane %v867, 2
      %v930 = vrot.slane %v868, 2
      %v931 = vsel %vm609, %v929, %v930
      %v932 = vrot.slane %v869, 2
      %v933 = vsel %vm609, %v930, %v932
      %v950 = vadd.f32 %v826, %v896
      %v951 = vadd.f32 %v827, %v898
      %v952 = vadd.f32 %v828, %v901
      %v953 = vadd.f32 %v829, %v903
      %v954 = vadd.f32 %v830, %v906
      %v955 = vadd.f32 %v831, %v908
      %v956 = vadd.f32 %v832, %v911
      %v957 = vadd.f32 %v833, %v913
      %v958 = vadd.f32 %v834, %v916
      %v959 = vadd.f32 %v835, %v918
      %v960 = vadd.f32 %v836, %v921
      %v961 = vadd.f32 %v837, %v923
      %v962 = vadd.f32 %v838, %v926
      %v963 = vadd.f32 %v839, %v928
      %v964 = vadd.f32 %v840, %v931
      %v965 = vadd.f32 %v841, %v933
      %v966 = vlaneseq
      %v967 = vshrl.u32 %v966, 7
      %v968 = vsub.s32 6, %v967
      %v969 = vrot.slane %v355, %v968
      %v970 = vmul.f32 %v365, %v969
      %v971 = vmul.f32 %v366, %v969
      %v972 = vmul.f32 %v368, %v969
      %v973 = vmul.f32 %v369, %v969
      %v974 = vmul.f32 %v371, %v969
      %v975 = vmul.f32 %v372, %v969
      %v976 = vmul.f32 %v374, %v969
      %v977 = vmul.f32 %v375, %v969
      %v978 = vmul.f32 %v377, %v969
      %v979 = vmul.f32 %v378, %v969
      %v980 = vmul.f32 %v380, %v969
      %v981 = vmul.f32 %v381, %v969
      %v982 = vmul.f32 %v383, %v969
      %v983 = vmul.f32 %v384, %v969
      %v984 = vmul.f32 %v386, %v969
      %v985 = vmul.f32 %v387, %v969
      %v986 = vadd.f32 %v950, %v970
      %v987 = vadd.f32 %v951, %v971
      %v988 = vadd.f32 %v952, %v972
      %v989 = vadd.f32 %v953, %v973
      %v990 = vadd.f32 %v954, %v974
      %v991 = vadd.f32 %v955, %v975
      %v992 = vadd.f32 %v956, %v976
      %v993 = vadd.f32 %v957, %v977
      %v994 = vadd.f32 %v958, %v978
      %v995 = vadd.f32 %v959, %v979
      %v996 = vadd.f32 %v960, %v980
      %v997 = vadd.f32 %v961, %v981
      %v998 = vadd.f32 %v962, %v982
      %v999 = vadd.f32 %v963, %v983
      %v1000 = vadd.f32 %v964, %v984
      %v1001 = vadd.f32 %v965, %v985
      %v1002 = vlaneseq
      %v1003 = vshrl.u32 %v1002, 7
      %v1004 = vsub.s32 7, %v1003
      %v1005 = vrot.slane %v355, %v1004
      %v1006 = vmul.f32 %v365, %v1005
      %v1007 = vmul.f32 %v366, %v1005
      %v1008 = vmul.f32 %v367, %v1005
      %v1009 = vmul.f32 %v368, %v1005
      %v1010 = vmul.f32 %v369, %v1005
      %v1011 = vmul.f32 %v370, %v1005
      %v1012 = vmul.f32 %v371, %v1005
      %v1013 = vmul.f32 %v372, %v1005
      %v1014 = vmul.f32 %v373, %v1005
      %v1015 = vmul.f32 %v374, %v1005
      %v1016 = vmul.f32 %v375, %v1005
      %v1017 = vmul.f32 %v376, %v1005
      %v1018 = vmul.f32 %v377, %v1005
      %v1019 = vmul.f32 %v378, %v1005
      %v1020 = vmul.f32 %v379, %v1005
      %v1021 = vmul.f32 %v380, %v1005
      %v1022 = vmul.f32 %v381, %v1005
      %v1023 = vmul.f32 %v382, %v1005
      %v1024 = vmul.f32 %v383, %v1005
      %v1025 = vmul.f32 %v384, %v1005
      %v1026 = vmul.f32 %v385, %v1005
      %v1027 = vmul.f32 %v386, %v1005
      %v1028 = vmul.f32 %v387, %v1005
      %v1029 = vmul.f32 %v388, %v1005
      %v1054 = vrot.slane %v1006, 1
      %v1055 = vrot.slane %v1007, 1
      %v1056 = vsel %vm484, %v1054, %v1055
      %v1057 = vrot.slane %v1008, 1
      %v1058 = vsel %vm484, %v1055, %v1057
      %v1059 = vrot.slane %v1009, 1
      %v1060 = vrot.slane %v1010, 1
      %v1061 = vsel %vm484, %v1059, %v1060
      %v1062 = vrot.slane %v1011, 1
      %v1063 = vsel %vm484, %v1060, %v1062
      %v1064 = vrot.slane %v1012, 1
      %v1065 = vrot.slane %v1013, 1
      %v1066 = vsel %vm484, %v1064, %v1065
      %v1067 = vrot.slane %v1014, 1
      %v1068 = vsel %vm484, %v1065, %v1067
      %v1069 = vrot.slane %v1015, 1
      %v1070 = vrot.slane %v1016, 1
      %v1071 = vsel %vm484, %v1069, %v1070
      %v1072 = vrot.slane %v1017, 1
      %v1073 = vsel %vm484, %v1070, %v1072
      %v1074 = vrot.slane %v1018, 1
      %v1075 = vrot.slane %v1019, 1
      %v1076 = vsel %vm484, %v1074, %v1075
      %v1077 = vrot.slane %v1020, 1
      %v1078 = vsel %vm484, %v1075, %v1077
      %v1079 = vrot.slane %v1021, 1
      %v1080 = vrot.slane %v1022, 1
      %v1081 = vsel %vm484, %v1079, %v1080
      %v1082 = vrot.slane %v1023, 1
      %v1083 = vsel %vm484, %v1080, %v1082
      %v1084 = vrot.slane %v1024, 1
      %v1085 = vrot.slane %v1025, 1
      %v1086 = vsel %vm484, %v1084, %v1085
      %v1087 = vrot.slane %v1026, 1
      %v1088 = vsel %vm484, %v1085, %v1087
      %v1089 = vrot.slane %v1027, 1
      %v1090 = vrot.slane %v1028, 1
      %v1091 = vsel %vm484, %v1089, %v1090
      %v1092 = vrot.slane %v1029, 1
      %v1093 = vsel %vm484, %v1090, %v1092
      %v1110 = vadd.f32 %v986, %v1056
      %v1111 = vadd.f32 %v987, %v1058
      %v1112 = vadd.f32 %v988, %v1061
      %v1113 = vadd.f32 %v989, %v1063
      %v1114 = vadd.f32 %v990, %v1066
      %v1115 = vadd.f32 %v991, %v1068
      %v1116 = vadd.f32 %v992, %v1071
      %v1117 = vadd.f32 %v993, %v1073
      %v1118 = vadd.f32 %v994, %v1076
      %v1119 = vadd.f32 %v995, %v1078
      %v1120 = vadd.f32 %v996, %v1081
      %v1121 = vadd.f32 %v997, %v1083
      %v1122 = vadd.f32 %v998, %v1086
      %v1123 = vadd.f32 %v999, %v1088
      %v1124 = vadd.f32 %v1000, %v1091
      %v1125 = vadd.f32 %v1001, %v1093
      %v1126 = vlaneseq
      %v1127 = vshrl.u32 %v1126, 7
      %v1128 = vsub.s32 0, %v1127
      %v1129 = vrot.slane %v356, %v1128
      %v1130 = vmul.f32 %v365, %v1129
      %v1131 = vmul.f32 %v366, %v1129
      %v1132 = vmul.f32 %v367, %v1129
      %v1133 = vmul.f32 %v368, %v1129
      %v1134 = vmul.f32 %v369, %v1129
      %v1135 = vmul.f32 %v370, %v1129
      %v1136 = vmul.f32 %v371, %v1129
      %v1137 = vmul.f32 %v372, %v1129
      %v1138 = vmul.f32 %v373, %v1129
      %v1139 = vmul.f32 %v374, %v1129
      %v1140 = vmul.f32 %v375, %v1129
      %v1141 = vmul.f32 %v376, %v1129
      %v1142 = vmul.f32 %v377, %v1129
      %v1143 = vmul.f32 %v378, %v1129
      %v1144 = vmul.f32 %v379, %v1129
      %v1145 = vmul.f32 %v380, %v1129
      %v1146 = vmul.f32 %v381, %v1129
      %v1147 = vmul.f32 %v382, %v1129
      %v1148 = vmul.f32 %v383, %v1129
      %v1149 = vmul.f32 %v384, %v1129
      %v1150 = vmul.f32 %v385, %v1129
      %v1151 = vmul.f32 %v386, %v1129
      %v1152 = vmul.f32 %v387, %v1129
      %v1153 = vmul.f32 %v388, %v1129
      %v1178 = vrot.slane %v1130, 2
      %v1179 = vrot.slane %v1131, 2
      %v1180 = vsel %vm609, %v1178, %v1179
      %v1181 = vrot.slane %v1132, 2
      %v1182 = vsel %vm609, %v1179, %v1181
      %v1183 = vrot.slane %v1133, 2
      %v1184 = vrot.slane %v1134, 2
      %v1185 = vsel %vm609, %v1183, %v1184
      %v1186 = vrot.slane %v1135, 2
      %v1187 = vsel %vm609, %v1184, %v1186
      %v1188 = vrot.slane %v1136, 2
      %v1189 = vrot.slane %v1137, 2
      %v1190 = vsel %vm609, %v1188, %v1189
      %v1191 = vrot.slane %v1138, 2
      %v1192 = vsel %vm609, %v1189, %v1191
      %v1193 = vrot.slane %v1139, 2
      %v1194 = vrot.slane %v1140, 2
      %v1195 = vsel %vm609, %v1193, %v1194
      %v1196 = vrot.slane %v1141, 2
      %v1197 = vsel %vm609, %v1194, %v1196
      %v1198 = vrot.slane %v1142, 2
      %v1199 = vrot.slane %v1143, 2
      %v1200 = vsel %vm609, %v1198, %v1199
      %v1201 = vrot.slane %v1144, 2
      %v1202 = vsel %vm609, %v1199, %v1201
      %v1203 = vrot.slane %v1145, 2
      %v1204 = vrot.slane %v1146, 2
      %v1205 = vsel %vm609, %v1203, %v1204
      %v1206 = vrot.slane %v1147, 2
      %v1207 = vsel %vm609, %v1204, %v1206
      %v1208 = vrot.slane %v1148, 2
      %v1209 = vrot.slane %v1149, 2
      %v1210 = vsel %vm609, %v1208, %v1209
      %v1211 = vrot.slane %v1150, 2
      %v1212 = vsel %vm609, %v1209, %v1211
      %v1213 = vrot.slane %v1151, 2
      %v1214 = vrot.slane %v1152, 2
      %v1215 = vsel %vm609, %v1213, %v1214
      %v1216 = vrot.slane %v1153, 2
      %v1217 = vsel %vm609, %v1214, %v1216
      %v1234 = vadd.f32 %v1110, %v1180
      %v1235 = vadd.f32 %v1111, %v1182
      %v1236 = vadd.f32 %v1112, %v1185
      %v1237 = vadd.f32 %v1113, %v1187
      %v1238 = vadd.f32 %v1114, %v1190
      %v1239 = vadd.f32 %v1115, %v1192
      %v1240 = vadd.f32 %v1116, %v1195
      %v1241 = vadd.f32 %v1117, %v1197
      %v1242 = vadd.f32 %v1118, %v1200
      %v1243 = vadd.f32 %v1119, %v1202
      %v1244 = vadd.f32 %v1120, %v1205
      %v1245 = vadd.f32 %v1121, %v1207
      %v1246 = vadd.f32 %v1122, %v1210
      %v1247 = vadd.f32 %v1123, %v1212
      %v1248 = vadd.f32 %v1124, %v1215
      %v1249 = vadd.f32 %v1125, %v1217
      %v1250 = vxor.u32 %v1234, 2147483648
      %v1251 = vxor.u32 %v1235, 2147483648
      %v1252 = vxor.u32 %v1236, 2147483648
      %v1253 = vxor.u32 %v1237, 2147483648
      %v1254 = vxor.u32 %v1238, 2147483648
      %v1255 = vxor.u32 %v1239, 2147483648
      %v1256 = vxor.u32 %v1240, 2147483648
      %v1257 = vxor.u32 %v1241, 2147483648
      %v1258 = vxor.u32 %v1242, 2147483648
      %v1259 = vxor.u32 %v1243, 2147483648
      %v1260 = vxor.u32 %v1244, 2147483648
      %v1261 = vxor.u32 %v1245, 2147483648
      %v1262 = vxor.u32 %v1246, 2147483648
      %v1263 = vxor.u32 %v1247, 2147483648
      %v1264 = vxor.u32 %v1248, 2147483648
      %v1265 = vxor.u32 %v1249, 2147483648
      %v1266 = vmul.f32 %v1250, 1.442695
      %v1267 = vpow.pop %v1266
      %v1268 = vmul.f32 %v1251, 1.442695
      %v1269 = vpow.pop %v1268
      %v1270 = vmul.f32 %v1252, 1.442695
      %v1271 = vpow.pop %v1270
      %v1272 = vmul.f32 %v1253, 1.442695
      %v1273 = vpow.pop %v1272
      %v1274 = vmul.f32 %v1254, 1.442695
      %v1275 = vpow.pop %v1274
      %v1276 = vmul.f32 %v1255, 1.442695
      %v1277 = vpow.pop %v1276
      %v1278 = vmul.f32 %v1256, 1.442695
      %v1279 = vpow.pop %v1278
      %v1280 = vmul.f32 %v1257, 1.442695
      %v1281 = vpow.pop %v1280
      %v1282 = vmul.f32 %v1258, 1.442695
      %v1283 = vpow.pop %v1282
      %v1284 = vmul.f32 %v1259, 1.442695
      %v1285 = vpow.pop %v1284
      %v1286 = vmul.f32 %v1260, 1.442695
      %v1287 = vpow.pop %v1286
      %v1288 = vmul.f32 %v1261, 1.442695
      %v1289 = vpow.pop %v1288
      %v1290 = vmul.f32 %v1262, 1.442695
      %v1291 = vpow.pop %v1290
      %v1292 = vmul.f32 %v1263, 1.442695
      %v1293 = vpow.pop %v1292
      %v1294 = vmul.f32 %v1264, 1.442695
      %v1295 = vpow.pop %v1294
      %v1296 = vmul.f32 %v1265, 1.442695
      %v1297 = vpow.pop %v1296
      %v1298 = vadd.f32 %v1267, 1.0
      %v1299 = vadd.f32 %v1269, 1.0
      %v1300 = vadd.f32 %v1271, 1.0
      %v1301 = vadd.f32 %v1273, 1.0
      %v1302 = vadd.f32 %v1275, 1.0
      %v1303 = vadd.f32 %v1277, 1.0
      %v1304 = vadd.f32 %v1279, 1.0
      %v1305 = vadd.f32 %v1281, 1.0
      %v1306 = vadd.f32 %v1283, 1.0
      %v1307 = vadd.f32 %v1285, 1.0
      %v1308 = vadd.f32 %v1287, 1.0
      %v1309 = vadd.f32 %v1289, 1.0
      %v1310 = vadd.f32 %v1291, 1.0
      %v1311 = vadd.f32 %v1293, 1.0
      %v1312 = vadd.f32 %v1295, 1.0
      %v1313 = vadd.f32 %v1297, 1.0
      %v1314 = vrcp.pop %v1298
      %v1315 = vmul.f32 1.0, %v1314
      %v1316 = vrcp.pop %v1299
      %v1317 = vmul.f32 1.0, %v1316
      %v1318 = vrcp.pop %v1300
      %v1319 = vmul.f32 1.0, %v1318
      %v1320 = vrcp.pop %v1301
      %v1321 = vmul.f32 1.0, %v1320
      %v1322 = vrcp.pop %v1302
      %v1323 = vmul.f32 1.0, %v1322
      %v1324 = vrcp.pop %v1303
      %v1325 = vmul.f32 1.0, %v1324
      %v1326 = vrcp.pop %v1304
      %v1327 = vmul.f32 1.0, %v1326
      %v1328 = vrcp.pop %v1305
      %v1329 = vmul.f32 1.0, %v1328
      %v1330 = vrcp.pop %v1306
      %v1331 = vmul.f32 1.0, %v1330
      %v1332 = vrcp.pop %v1307
      %v1333 = vmul.f32 1.0, %v1332
      %v1334 = vrcp.pop %v1308
      %v1335 = vmul.f32 1.0, %v1334
      %v1336 = vrcp.pop %v1309
      %v1337 = vmul.f32 1.0, %v1336
      %v1338 = vrcp.pop %v1310
      %v1339 = vmul.f32 1.0, %v1338
      %v1340 = vrcp.pop %v1311
      %v1341 = vmul.f32 1.0, %v1340
      %v1342 = vrcp.pop %v1312
      %v1343 = vmul.f32 1.0, %v1342
      %v1344 = vrcp.pop %v1313
      %v1345 = vmul.f32 1.0, %v1344
      %v1346 = vmul.f32 %v1234, %v1315
      %v1347 = vmul.f32 %v1235, %v1317
      %v1348 = vmul.f32 %v1236, %v1319
      %v1349 = vmul.f32 %v1237, %v1321
      %v1350 = vmul.f32 %v1238, %v1323
      %v1351 = vmul.f32 %v1239, %v1325
      %v1352 = vmul.f32 %v1240, %v1327
      %v1353 = vmul.f32 %v1241, %v1329
      %v1354 = vmul.f32 %v1242, %v1331
      %v1355 = vmul.f32 %v1243, %v1333
      %v1356 = vmul.f32 %v1244, %v1335
      %v1357 = vmul.f32 %v1245, %v1337
      %v1358 = vmul.f32 %v1246, %v1339
      %v1359 = vmul.f32 %v1247, %v1341
      %v1360 = vmul.f32 %v1248, %v1343
      %v1361 = vmul.f32 %v1249, %v1345
      %v1362 = vld [vmem:[%s4] sm:$0xf]
      %v1364 = vlaneseq
      %v1365 = vshrl.u32 %v1364, 7
      %v1366 = vsub.s32 0, %v1365
      %v1367 = vrot.slane %v358, %v1366
      %v1369 = vadd.f32 %v1367, 0.0
      %1371 = vset.pattern.permute.xlu0 0
      %1372 = vperm.xlu0 %1371, %v1346
      %v1373 = vpop.permute.xlu0 %1372
      %1376 = vset.pattern.permute.xlu0 0
      %1377 = vperm.xlu0 %1376, %v1347
      %v1378 = vpop.permute.xlu0 %1377
      %1381 = vset.pattern.permute.xlu0 0
      %1382 = vperm.xlu0 %1381, %v1348
      %v1383 = vpop.permute.xlu0 %1382
      %1386 = vset.pattern.permute.xlu0 0
      %1387 = vperm.xlu0 %1386, %v1349
      %v1388 = vpop.permute.xlu0 %1387
      %1391 = vset.pattern.permute.xlu0 0
      %1392 = vperm.xlu0 %1391, %v1350
      %v1393 = vpop.permute.xlu0 %1392
      %1396 = vset.pattern.permute.xlu0 0
      %1397 = vperm.xlu0 %1396, %v1351
      %v1398 = vpop.permute.xlu0 %1397
      %1401 = vset.pattern.permute.xlu0 0
      %1402 = vperm.xlu0 %1401, %v1352
      %v1403 = vpop.permute.xlu0 %1402
      %1406 = vset.pattern.permute.xlu0 0
      %1407 = vperm.xlu0 %1406, %v1353
      %v1408 = vpop.permute.xlu0 %1407
      %1411 = vset.pattern.permute.xlu0 0
      %1412 = vperm.xlu0 %1411, %v1354
      %v1413 = vpop.permute.xlu0 %1412
      %1416 = vset.pattern.permute.xlu0 0
      %1417 = vperm.xlu0 %1416, %v1355
      %v1418 = vpop.permute.xlu0 %1417
      %1421 = vset.pattern.permute.xlu0 0
      %1422 = vperm.xlu0 %1421, %v1356
      %v1423 = vpop.permute.xlu0 %1422
      %1426 = vset.pattern.permute.xlu0 0
      %1427 = vperm.xlu0 %1426, %v1357
      %v1428 = vpop.permute.xlu0 %1427
      %1431 = vset.pattern.permute.xlu0 0
      %1432 = vperm.xlu0 %1431, %v1358
      %v1433 = vpop.permute.xlu0 %1432
      %1436 = vset.pattern.permute.xlu0 0
      %1437 = vperm.xlu0 %1436, %v1359
      %v1438 = vpop.permute.xlu0 %1437
      %1441 = vset.pattern.permute.xlu0 0
      %1442 = vperm.xlu0 %1441, %v1360
      %v1443 = vpop.permute.xlu0 %1442
      %1446 = vset.pattern.permute.xlu0 0
      %1447 = vperm.xlu0 %1446, %v1361
      %v1448 = vpop.permute.xlu0 %1447
      %v1450 = vlaneseq
      %v1451 = vshrl.u32 %v1450, 7
      %v1452 = vsub.s32 0, %v1451
      %v1453 = vrot.slane %v1362, %v1452
      %v1454 = vmul.f32 %v1373, %v1453
      %v1455 = vmul.f32 %v1378, %v1453
      %v1456 = vmul.f32 %v1383, %v1453
      %v1457 = vmul.f32 %v1388, %v1453
      %v1458 = vmul.f32 %v1393, %v1453
      %v1459 = vmul.f32 %v1398, %v1453
      %v1460 = vmul.f32 %v1403, %v1453
      %v1461 = vmul.f32 %v1408, %v1453
      %v1462 = vmul.f32 %v1413, %v1453
      %v1463 = vmul.f32 %v1418, %v1453
      %v1464 = vmul.f32 %v1423, %v1453
      %v1465 = vmul.f32 %v1428, %v1453
      %v1466 = vmul.f32 %v1433, %v1453
      %v1467 = vmul.f32 %v1438, %v1453
      %v1468 = vmul.f32 %v1443, %v1453
      %v1469 = vmul.f32 %v1448, %v1453
      %v1470 = vadd.f32 %v1369, %v1454
      %v1471 = vadd.f32 %v1369, %v1455
      %v1472 = vadd.f32 %v1369, %v1456
      %v1473 = vadd.f32 %v1369, %v1457
      %v1474 = vadd.f32 %v1369, %v1458
      %v1475 = vadd.f32 %v1369, %v1459
      %v1476 = vadd.f32 %v1369, %v1460
      %v1477 = vadd.f32 %v1369, %v1461
      %v1478 = vadd.f32 %v1369, %v1462
      %v1479 = vadd.f32 %v1369, %v1463
      %v1480 = vadd.f32 %v1369, %v1464
      %v1481 = vadd.f32 %v1369, %v1465
      %v1482 = vadd.f32 %v1369, %v1466
      %v1483 = vadd.f32 %v1369, %v1467
      %v1484 = vadd.f32 %v1369, %v1468
      %v1485 = vadd.f32 %v1369, %v1469
      %1486 = vset.pattern.permute.xlu0 1
      %1487 = vperm.xlu0 %1486, %v1346
      %v1488 = vpop.permute.xlu0 %1487
      %1490 = vset.pattern.permute.xlu0 1
      %1491 = vperm.xlu0 %1490, %v1347
      %v1492 = vpop.permute.xlu0 %1491
      %1494 = vset.pattern.permute.xlu0 1
      %1495 = vperm.xlu0 %1494, %v1348
      %v1496 = vpop.permute.xlu0 %1495
      %1498 = vset.pattern.permute.xlu0 1
      %1499 = vperm.xlu0 %1498, %v1349
      %v1500 = vpop.permute.xlu0 %1499
      %1502 = vset.pattern.permute.xlu0 1
      %1503 = vperm.xlu0 %1502, %v1350
      %v1504 = vpop.permute.xlu0 %1503
      %1506 = vset.pattern.permute.xlu0 1
      %1507 = vperm.xlu0 %1506, %v1351
      %v1508 = vpop.permute.xlu0 %1507
      %1510 = vset.pattern.permute.xlu0 1
      %1511 = vperm.xlu0 %1510, %v1352
      %v1512 = vpop.permute.xlu0 %1511
      %1514 = vset.pattern.permute.xlu0 1
      %1515 = vperm.xlu0 %1514, %v1353
      %v1516 = vpop.permute.xlu0 %1515
      %1518 = vset.pattern.permute.xlu0 1
      %1519 = vperm.xlu0 %1518, %v1354
      %v1520 = vpop.permute.xlu0 %1519
      %1522 = vset.pattern.permute.xlu0 1
      %1523 = vperm.xlu0 %1522, %v1355
      %v1524 = vpop.permute.xlu0 %1523
      %1526 = vset.pattern.permute.xlu0 1
      %1527 = vperm.xlu0 %1526, %v1356
      %v1528 = vpop.permute.xlu0 %1527
      %1530 = vset.pattern.permute.xlu0 1
      %1531 = vperm.xlu0 %1530, %v1357
      %v1532 = vpop.permute.xlu0 %1531
      %1534 = vset.pattern.permute.xlu0 1
      %1535 = vperm.xlu0 %1534, %v1358
      %v1536 = vpop.permute.xlu0 %1535
      %1538 = vset.pattern.permute.xlu0 1
      %1539 = vperm.xlu0 %1538, %v1359
      %v1540 = vpop.permute.xlu0 %1539
      %1542 = vset.pattern.permute.xlu0 1
      %1543 = vperm.xlu0 %1542, %v1360
      %v1544 = vpop.permute.xlu0 %1543
      %1546 = vset.pattern.permute.xlu0 1
      %1547 = vperm.xlu0 %1546, %v1361
      %v1548 = vpop.permute.xlu0 %1547
      %v1550 = vlaneseq
      %v1551 = vshrl.u32 %v1550, 7
      %v1552 = vsub.s32 1, %v1551
      %v1553 = vrot.slane %v1362, %v1552
      %v1554 = vmul.f32 %v1488, %v1553
      %v1555 = vmul.f32 %v1492, %v1553
      %v1556 = vmul.f32 %v1496, %v1553
      %v1557 = vmul.f32 %v1500, %v1553
      %v1558 = vmul.f32 %v1504, %v1553
      %v1559 = vmul.f32 %v1508, %v1553
      %v1560 = vmul.f32 %v1512, %v1553
      %v1561 = vmul.f32 %v1516, %v1553
      %v1562 = vmul.f32 %v1520, %v1553
      %v1563 = vmul.f32 %v1524, %v1553
      %v1564 = vmul.f32 %v1528, %v1553
      %v1565 = vmul.f32 %v1532, %v1553
      %v1566 = vmul.f32 %v1536, %v1553
      %v1567 = vmul.f32 %v1540, %v1553
      %v1568 = vmul.f32 %v1544, %v1553
      %v1569 = vmul.f32 %v1548, %v1553
      %v1570 = vadd.f32 %v1470, %v1554
      %v1571 = vadd.f32 %v1471, %v1555
      %v1572 = vadd.f32 %v1472, %v1556
      %v1573 = vadd.f32 %v1473, %v1557
      %v1574 = vadd.f32 %v1474, %v1558
      %v1575 = vadd.f32 %v1475, %v1559
      %v1576 = vadd.f32 %v1476, %v1560
      %v1577 = vadd.f32 %v1477, %v1561
      %v1578 = vadd.f32 %v1478, %v1562
      %v1579 = vadd.f32 %v1479, %v1563
      %v1580 = vadd.f32 %v1480, %v1564
      %v1581 = vadd.f32 %v1481, %v1565
      %v1582 = vadd.f32 %v1482, %v1566
      %v1583 = vadd.f32 %v1483, %v1567
      %v1584 = vadd.f32 %v1484, %v1568
      %v1585 = vadd.f32 %v1485, %v1569
      %1586 = vset.pattern.permute.xlu0 2
      %1587 = vperm.xlu0 %1586, %v1346
      %v1588 = vpop.permute.xlu0 %1587
      %1590 = vset.pattern.permute.xlu0 2
      %1591 = vperm.xlu0 %1590, %v1347
      %v1592 = vpop.permute.xlu0 %1591
      %1594 = vset.pattern.permute.xlu0 2
      %1595 = vperm.xlu0 %1594, %v1348
      %v1596 = vpop.permute.xlu0 %1595
      %1598 = vset.pattern.permute.xlu0 2
      %1599 = vperm.xlu0 %1598, %v1349
      %v1600 = vpop.permute.xlu0 %1599
      %1602 = vset.pattern.permute.xlu0 2
      %1603 = vperm.xlu0 %1602, %v1350
      %v1604 = vpop.permute.xlu0 %1603
      %1606 = vset.pattern.permute.xlu0 2
      %1607 = vperm.xlu0 %1606, %v1351
      %v1608 = vpop.permute.xlu0 %1607
      %1610 = vset.pattern.permute.xlu0 2
      %1611 = vperm.xlu0 %1610, %v1352
      %v1612 = vpop.permute.xlu0 %1611
      %1614 = vset.pattern.permute.xlu0 2
      %1615 = vperm.xlu0 %1614, %v1353
      %v1616 = vpop.permute.xlu0 %1615
      %1618 = vset.pattern.permute.xlu0 2
      %1619 = vperm.xlu0 %1618, %v1354
      %v1620 = vpop.permute.xlu0 %1619
      %1622 = vset.pattern.permute.xlu0 2
      %1623 = vperm.xlu0 %1622, %v1355
      %v1624 = vpop.permute.xlu0 %1623
      %1626 = vset.pattern.permute.xlu0 2
      %1627 = vperm.xlu0 %1626, %v1356
      %v1628 = vpop.permute.xlu0 %1627
      %1630 = vset.pattern.permute.xlu0 2
      %1631 = vperm.xlu0 %1630, %v1357
      %v1632 = vpop.permute.xlu0 %1631
      %1634 = vset.pattern.permute.xlu0 2
      %1635 = vperm.xlu0 %1634, %v1358
      %v1636 = vpop.permute.xlu0 %1635
      %1638 = vset.pattern.permute.xlu0 2
      %1639 = vperm.xlu0 %1638, %v1359
      %v1640 = vpop.permute.xlu0 %1639
      %1642 = vset.pattern.permute.xlu0 2
      %1643 = vperm.xlu0 %1642, %v1360
      %v1644 = vpop.permute.xlu0 %1643
      %1646 = vset.pattern.permute.xlu0 2
      %1647 = vperm.xlu0 %1646, %v1361
      %v1648 = vpop.permute.xlu0 %1647
      %v1650 = vlaneseq
      %v1651 = vshrl.u32 %v1650, 7
      %v1652 = vsub.s32 2, %v1651
      %v1653 = vrot.slane %v1362, %v1652
      %v1654 = vmul.f32 %v1588, %v1653
      %v1655 = vmul.f32 %v1592, %v1653
      %v1656 = vmul.f32 %v1596, %v1653
      %v1657 = vmul.f32 %v1600, %v1653
      %v1658 = vmul.f32 %v1604, %v1653
      %v1659 = vmul.f32 %v1608, %v1653
      %v1660 = vmul.f32 %v1612, %v1653
      %v1661 = vmul.f32 %v1616, %v1653
      %v1662 = vmul.f32 %v1620, %v1653
      %v1663 = vmul.f32 %v1624, %v1653
      %v1664 = vmul.f32 %v1628, %v1653
      %v1665 = vmul.f32 %v1632, %v1653
      %v1666 = vmul.f32 %v1636, %v1653
      %v1667 = vmul.f32 %v1640, %v1653
      %v1668 = vmul.f32 %v1644, %v1653
      %v1669 = vmul.f32 %v1648, %v1653
      %v1670 = vadd.f32 %v1570, %v1654
      %v1671 = vadd.f32 %v1571, %v1655
      %v1672 = vadd.f32 %v1572, %v1656
      %v1673 = vadd.f32 %v1573, %v1657
      %v1674 = vadd.f32 %v1574, %v1658
      %v1675 = vadd.f32 %v1575, %v1659
      %v1676 = vadd.f32 %v1576, %v1660
      %v1677 = vadd.f32 %v1577, %v1661
      %v1678 = vadd.f32 %v1578, %v1662
      %v1679 = vadd.f32 %v1579, %v1663
      %v1680 = vadd.f32 %v1580, %v1664
      %v1681 = vadd.f32 %v1581, %v1665
      %v1682 = vadd.f32 %v1582, %v1666
      %v1683 = vadd.f32 %v1583, %v1667
      %v1684 = vadd.f32 %v1584, %v1668
      %v1685 = vadd.f32 %v1585, %v1669
      %1686 = vset.pattern.permute.xlu0 3
      %1687 = vperm.xlu0 %1686, %v1346
      %v1688 = vpop.permute.xlu0 %1687
      %1690 = vset.pattern.permute.xlu0 3
      %1691 = vperm.xlu0 %1690, %v1347
      %v1692 = vpop.permute.xlu0 %1691
      %1694 = vset.pattern.permute.xlu0 3
      %1695 = vperm.xlu0 %1694, %v1348
      %v1696 = vpop.permute.xlu0 %1695
      %1698 = vset.pattern.permute.xlu0 3
      %1699 = vperm.xlu0 %1698, %v1349
      %v1700 = vpop.permute.xlu0 %1699
      %1702 = vset.pattern.permute.xlu0 3
      %1703 = vperm.xlu0 %1702, %v1350
      %v1704 = vpop.permute.xlu0 %1703
      %1706 = vset.pattern.permute.xlu0 3
      %1707 = vperm.xlu0 %1706, %v1351
      %v1708 = vpop.permute.xlu0 %1707
      %1710 = vset.pattern.permute.xlu0 3
      %1711 = vperm.xlu0 %1710, %v1352
      %v1712 = vpop.permute.xlu0 %1711
      %1714 = vset.pattern.permute.xlu0 3
      %1715 = vperm.xlu0 %1714, %v1353
      %v1716 = vpop.permute.xlu0 %1715
      %1718 = vset.pattern.permute.xlu0 3
      %1719 = vperm.xlu0 %1718, %v1354
      %v1720 = vpop.permute.xlu0 %1719
      %1722 = vset.pattern.permute.xlu0 3
      %1723 = vperm.xlu0 %1722, %v1355
      %v1724 = vpop.permute.xlu0 %1723
      %1726 = vset.pattern.permute.xlu0 3
      %1727 = vperm.xlu0 %1726, %v1356
      %v1728 = vpop.permute.xlu0 %1727
      %1730 = vset.pattern.permute.xlu0 3
      %1731 = vperm.xlu0 %1730, %v1357
      %v1732 = vpop.permute.xlu0 %1731
      %1734 = vset.pattern.permute.xlu0 3
      %1735 = vperm.xlu0 %1734, %v1358
      %v1736 = vpop.permute.xlu0 %1735
      %1738 = vset.pattern.permute.xlu0 3
      %1739 = vperm.xlu0 %1738, %v1359
      %v1740 = vpop.permute.xlu0 %1739
      %1742 = vset.pattern.permute.xlu0 3
      %1743 = vperm.xlu0 %1742, %v1360
      %v1744 = vpop.permute.xlu0 %1743
      %1746 = vset.pattern.permute.xlu0 3
      %1747 = vperm.xlu0 %1746, %v1361
      %v1748 = vpop.permute.xlu0 %1747
      %v1750 = vlaneseq
      %v1751 = vshrl.u32 %v1750, 7
      %v1752 = vsub.s32 3, %v1751
      %v1753 = vrot.slane %v1362, %v1752
      %v1754 = vmul.f32 %v1688, %v1753
      %v1755 = vmul.f32 %v1692, %v1753
      %v1756 = vmul.f32 %v1696, %v1753
      %v1757 = vmul.f32 %v1700, %v1753
      %v1758 = vmul.f32 %v1704, %v1753
      %v1759 = vmul.f32 %v1708, %v1753
      %v1760 = vmul.f32 %v1712, %v1753
      %v1761 = vmul.f32 %v1716, %v1753
      %v1762 = vmul.f32 %v1720, %v1753
      %v1763 = vmul.f32 %v1724, %v1753
      %v1764 = vmul.f32 %v1728, %v1753
      %v1765 = vmul.f32 %v1732, %v1753
      %v1766 = vmul.f32 %v1736, %v1753
      %v1767 = vmul.f32 %v1740, %v1753
      %v1768 = vmul.f32 %v1744, %v1753
      %v1769 = vmul.f32 %v1748, %v1753
      %v1770 = vadd.f32 %v1670, %v1754
      %v1771 = vadd.f32 %v1671, %v1755
      %v1772 = vadd.f32 %v1672, %v1756
      %v1773 = vadd.f32 %v1673, %v1757
      %v1774 = vadd.f32 %v1674, %v1758
      %v1775 = vadd.f32 %v1675, %v1759
      %v1776 = vadd.f32 %v1676, %v1760
      %v1777 = vadd.f32 %v1677, %v1761
      %v1778 = vadd.f32 %v1678, %v1762
      %v1779 = vadd.f32 %v1679, %v1763
      %v1780 = vadd.f32 %v1680, %v1764
      %v1781 = vadd.f32 %v1681, %v1765
      %v1782 = vadd.f32 %v1682, %v1766
      %v1783 = vadd.f32 %v1683, %v1767
      %v1784 = vadd.f32 %v1684, %v1768
      %v1785 = vadd.f32 %v1685, %v1769
      %v1786 = vxor.u32 %v1770, 2147483648
      %v1787 = vxor.u32 %v1771, 2147483648
      %v1788 = vxor.u32 %v1772, 2147483648
      %v1789 = vxor.u32 %v1773, 2147483648
      %v1790 = vxor.u32 %v1774, 2147483648
      %v1791 = vxor.u32 %v1775, 2147483648
      %v1792 = vxor.u32 %v1776, 2147483648
      %v1793 = vxor.u32 %v1777, 2147483648
      %v1794 = vxor.u32 %v1778, 2147483648
      %v1795 = vxor.u32 %v1779, 2147483648
      %v1796 = vxor.u32 %v1780, 2147483648
      %v1797 = vxor.u32 %v1781, 2147483648
      %v1798 = vxor.u32 %v1782, 2147483648
      %v1799 = vxor.u32 %v1783, 2147483648
      %v1800 = vxor.u32 %v1784, 2147483648
      %v1801 = vxor.u32 %v1785, 2147483648
      %v1802 = vmul.f32 %v1786, 1.442695
      %v1803 = vpow.pop %v1802
      %v1804 = vmul.f32 %v1787, 1.442695
      %v1805 = vpow.pop %v1804
      %v1806 = vmul.f32 %v1788, 1.442695
      %v1807 = vpow.pop %v1806
      %v1808 = vmul.f32 %v1789, 1.442695
      %v1809 = vpow.pop %v1808
      %v1810 = vmul.f32 %v1790, 1.442695
      %v1811 = vpow.pop %v1810
      %v1812 = vmul.f32 %v1791, 1.442695
      %v1813 = vpow.pop %v1812
      %v1814 = vmul.f32 %v1792, 1.442695
      %v1815 = vpow.pop %v1814
      %v1816 = vmul.f32 %v1793, 1.442695
      %v1817 = vpow.pop %v1816
      %v1818 = vmul.f32 %v1794, 1.442695
      %v1819 = vpow.pop %v1818
      %v1820 = vmul.f32 %v1795, 1.442695
      %v1821 = vpow.pop %v1820
      %v1822 = vmul.f32 %v1796, 1.442695
      %v1823 = vpow.pop %v1822
      %v1824 = vmul.f32 %v1797, 1.442695
      %v1825 = vpow.pop %v1824
      %v1826 = vmul.f32 %v1798, 1.442695
      %v1827 = vpow.pop %v1826
      %v1828 = vmul.f32 %v1799, 1.442695
      %v1829 = vpow.pop %v1828
      %v1830 = vmul.f32 %v1800, 1.442695
      %v1831 = vpow.pop %v1830
      %v1832 = vmul.f32 %v1801, 1.442695
      %v1833 = vpow.pop %v1832
      %v1834 = vadd.f32 %v1803, 1.0
      %v1835 = vadd.f32 %v1805, 1.0
      %v1836 = vadd.f32 %v1807, 1.0
      %v1837 = vadd.f32 %v1809, 1.0
      %v1838 = vadd.f32 %v1811, 1.0
      %v1839 = vadd.f32 %v1813, 1.0
      %v1840 = vadd.f32 %v1815, 1.0
      %v1841 = vadd.f32 %v1817, 1.0
      %v1842 = vadd.f32 %v1819, 1.0
      %v1843 = vadd.f32 %v1821, 1.0
      %v1844 = vadd.f32 %v1823, 1.0
      %v1845 = vadd.f32 %v1825, 1.0
      %v1846 = vadd.f32 %v1827, 1.0
      %v1847 = vadd.f32 %v1829, 1.0
      %v1848 = vadd.f32 %v1831, 1.0
      %v1849 = vadd.f32 %v1833, 1.0
      %v1850 = vrcp.pop %v1834
      %v1851 = vmul.f32 1.0, %v1850
      %v1852 = vrcp.pop %v1835
      %v1853 = vmul.f32 1.0, %v1852
      %v1854 = vrcp.pop %v1836
      %v1855 = vmul.f32 1.0, %v1854
      %v1856 = vrcp.pop %v1837
      %v1857 = vmul.f32 1.0, %v1856
      %v1858 = vrcp.pop %v1838
      %v1859 = vmul.f32 1.0, %v1858
      %v1860 = vrcp.pop %v1839
      %v1861 = vmul.f32 1.0, %v1860
      %v1862 = vrcp.pop %v1840
      %v1863 = vmul.f32 1.0, %v1862
      %v1864 = vrcp.pop %v1841
      %v1865 = vmul.f32 1.0, %v1864
      %v1866 = vrcp.pop %v1842
      %v1867 = vmul.f32 1.0, %v1866
      %v1868 = vrcp.pop %v1843
      %v1869 = vmul.f32 1.0, %v1868
      %v1870 = vrcp.pop %v1844
      %v1871 = vmul.f32 1.0, %v1870
      %v1872 = vrcp.pop %v1845
      %v1873 = vmul.f32 1.0, %v1872
      %v1874 = vrcp.pop %v1846
      %v1875 = vmul.f32 1.0, %v1874
      %v1876 = vrcp.pop %v1847
      %v1877 = vmul.f32 1.0, %v1876
      %v1878 = vrcp.pop %v1848
      %v1879 = vmul.f32 1.0, %v1878
      %v1880 = vrcp.pop %v1849
      %v1881 = vmul.f32 1.0, %v1880
      %v1882 = vmul.f32 %v1770, %v1851
      %v1883 = vmul.f32 %v1771, %v1853
      %v1884 = vmul.f32 %v1772, %v1855
      %v1885 = vmul.f32 %v1773, %v1857
      %v1886 = vmul.f32 %v1774, %v1859
      %v1887 = vmul.f32 %v1775, %v1861
      %v1888 = vmul.f32 %v1776, %v1863
      %v1889 = vmul.f32 %v1777, %v1865
      %v1890 = vmul.f32 %v1778, %v1867
      %v1891 = vmul.f32 %v1779, %v1869
      %v1892 = vmul.f32 %v1780, %v1871
      %v1893 = vmul.f32 %v1781, %v1873
      %v1894 = vmul.f32 %v1782, %v1875
      %v1895 = vmul.f32 %v1783, %v1877
      %v1896 = vmul.f32 %v1784, %v1879
      %v1897 = vmul.f32 %v1785, %v1881
      %vm1898 = vcmask 64512
      %1899 = vst.msk [vmem:[%s353] sm:$0xff] %vm1898, %v1882
      %1900 = vst.msk [vmem:[%s353 + $0x8] sm:$0xff] %vm1898, %v1883
      %1901 = vst.msk [vmem:[%s353 + $0x10] sm:$0xff] %vm1898, %v1884
      %1902 = vst.msk [vmem:[%s353 + $0x18] sm:$0xff] %vm1898, %v1885
      %1903 = vst.msk [vmem:[%s353 + $0x20] sm:$0xff] %vm1898, %v1886
      %1904 = vst.msk [vmem:[%s353 + $0x28] sm:$0xff] %vm1898, %v1887
      %1905 = vst.msk [vmem:[%s353 + $0x30] sm:$0xff] %vm1898, %v1888
      %1906 = vst.msk [vmem:[%s353 + $0x38] sm:$0xff] %vm1898, %v1889
      %1907 = vst.msk [vmem:[%s353 + $0x40] sm:$0xff] %vm1898, %v1890
      %1908 = vst.msk [vmem:[%s353 + $0x48] sm:$0xff] %vm1898, %v1891
      %1909 = vst.msk [vmem:[%s353 + $0x50] sm:$0xff] %vm1898, %v1892
      %1910 = vst.msk [vmem:[%s353 + $0x58] sm:$0xff] %vm1898, %v1893
      %1911 = vst.msk [vmem:[%s353 + $0x60] sm:$0xff] %vm1898, %v1894
      %1912 = vst.msk [vmem:[%s353 + $0x68] sm:$0xff] %vm1898, %v1895
      %1913 = vst.msk [vmem:[%s353 + $0x70] sm:$0xff] %vm1898, %v1896
      %1914 = vst.msk [vmem:[%s353 + $0x78] sm:$0xff] %vm1898, %v1897
      %s1915 = smul.u32 8, %s22
      %p1916 = scmp.lt.s32.totalorder %s21, 1
      %s1917 = scalar_select %p1916, %s21, 1
      %p1918 = scmp.lt.s32.totalorder %s1915, 15
      %s1919 = scalar_select %p1918, %s1915, 15
      %s1920 = smul.addr %s1919, 2
      %s1921 = smul.addr %s1917, 32
      %s1922 = sadd.s32 %s1920, %s1921
      %s1923 = smul.addr %s1922, 8
      %s1924 = scalar_lea.vmem %s6, %s1923
      // Predicated region
      $region45: #{tpu_custom_call.1} parent=43 // pred_check
        %p1925 = pneg %p189
      $region46: #{tpu_custom_call.1} parent=43 // pred_check_branch
        %1927 = sbr.rel (%p1925) target = $region48
      $region47: #{tpu_custom_call.1} parent=43 // pred_region
        %s1928 = smul.u32 8, %s22
      $region48: #{tpu_custom_call.1} parent=43 // pred_fallthru
        _
    $region44: #{tpu_custom_call.1} parent=5 // pred_fallthru
      _
    %p1929 = scmp.le.s32.totalorder 2, %s12
    // Predicated region
    $region49: #{tpu_custom_call.1} parent=5 // pred_check
      %p1930 = pneg %p1929
    $region50: #{tpu_custom_call.1} parent=5 // pred_check_branch
      %1932 = sbr.rel (%p1930) target = $region52
    $region51: #{tpu_custom_call.1} parent=5 // pred_region
      %s1933 = ssub.s32 %s12, 2
      // Predicated region
      $region53: #{tpu_custom_call.1} parent=51 // pred_check
        %p1934 = pneg %p195
      $region54: #{tpu_custom_call.1} parent=51 // pred_check_branch
        %1936 = sbr.rel (%p1934) target = $region56
      $region55: #{tpu_custom_call.1} parent=51 // pred_region
        %s1937 = smul.u32 8, %s24
        %p1938 = scmp.lt.s32.totalorder %s23, 1
        %s1939 = scalar_select %p1938, %s23, 1
        %p1940 = scmp.lt.s32.totalorder %s1937, 15
        %s1941 = scalar_select %p1940, %s1937, 15
        %s1942 = smul.addr %s1941, 2
        %s1943 = smul.addr %s1939, 32
        %s1944 = sadd.s32 %s1942, %s1943
        %s1945 = smul.addr %s1944, 8
        %s1946 = scalar_lea.vmem %s6, %s1945
      $region56: #{tpu_custom_call.1} parent=51 // pred_fallthru
        _
    $region52: #{tpu_custom_call.1} parent=5 // pred_fallthru
      _
  $region6: #{tpu_custom_call.1} parent=0 // loop_footer
    %s16 = sadd.s32 1, %s12
  $region7: #{tpu_custom_call.1} parent=0 // loop_footer_branch
    %11 = sbr.rel target = $region3
  $region8: #{tpu_custom_call.1} parent=0 // loop_exit
    _

</llo_original>
